<compile_context>
chip_gen: v6e
topology: v6e:2x2x1
jax: 0.10.0
libtpu: 0.0.40
codegen_flags: <defaults>
</compile_context>

<pallas_src>
import math
import functools

import jax
import jax.numpy as jnp
from jax import lax
from jax.experimental import pallas as pl
from jax.experimental.pallas import tpu as pltpu


_INV_SQRT2 = 1.0 / math.sqrt(2.0)


def _round_up(n, m):
    return ((n + m - 1) // m) * m


def _gelu_sigmoid_gate(inter, gate):
    # Exact (erf-based) GELU to match nn.GELU(); sigmoid gating; fp32 throughout.
    act = 0.5 * inter * (1.0 + lax.erf(inter * _INV_SQRT2))
    return act * jax.nn.sigmoid(gate)


def _layer_norm(h, gamma, beta, eps):
    mean = jnp.mean(h, axis=-1, keepdims=True)
    var = jnp.mean((h - mean) ** 2, axis=-1, keepdims=True)
    return (h - mean) * lax.rsqrt(var + eps) * gamma + beta


def _ffn_kernel_resident(x_ref, wu_ref, bu_ref, wo_ref, bo_ref, gamma_ref,
                         beta_ref, o_ref, *, eps, ti):
    """Whole intermediate dim resident: single pass per (tm, H) token tile.

    x_ref   : (tm, H)    token tile (original dtype)
    wu_ref  : (H, 2*ti)  fused up-projection [W_int | W_gate] (bf16)
    bu_ref  : (1, 2*ti)  fused up-projection bias (fp32)
    wo_ref  : (ti, H)    down-projection (bf16)
    bo_ref/gamma/beta: (1, H) fp32
    o_ref   : (tm, H)    output tile
    """
    x = x_ref[...]
    x_mm = x.astype(wu_ref.dtype)             # bf16 operands -> full-rate MXU

    up = jnp.dot(x_mm, wu_ref[...], preferred_element_type=jnp.float32)
    up = up + bu_ref[...]
    gated = _gelu_sigmoid_gate(up[:, :ti], up[:, ti:])

    proj = jnp.dot(gated.astype(wo_ref.dtype), wo_ref[...],
                   preferred_element_type=jnp.float32)
    h = x.astype(jnp.float32) + proj + bo_ref[...]
    o_ref[...] = _layer_norm(h, gamma_ref[...], beta_ref[...], eps).astype(o_ref.dtype)


def _ffn_kernel_chunked(x_ref, wu_ref, bu_ref, wo_ref, bo_ref, gamma_ref,
                        beta_ref, o_ref, acc_ref, *, eps, ti):
    """Intermediate dim split into I-chunks (grid axis 1 = reduction).

    acc_ref : (tm, H) fp32 accumulator across the I-chunk axis.
    """
    k = pl.program_id(1)

    @pl.when(k == 0)
    def _():
        acc_ref[...] = jnp.zeros_like(acc_ref)

    x = x_ref[...]
    x_mm = x.astype(wu_ref.dtype)

    up = jnp.dot(x_mm, wu_ref[...], preferred_element_type=jnp.float32)
    up = up + bu_ref[...]
    gated = _gelu_sigmoid_gate(up[:, :ti], up[:, ti:])

    acc_ref[...] += jnp.dot(gated.astype(wo_ref.dtype), wo_ref[...],
                            preferred_element_type=jnp.float32)

    # Residual + LayerNorm once all I-chunks are accumulated (fp32 throughout).
    @pl.when(k == pl.num_programs(1) - 1)
    def _():
        h = x.astype(jnp.float32) + acc_ref[...] + bo_ref[...]
        o_ref[...] = _layer_norm(h, gamma_ref[...], beta_ref[...], eps).astype(o_ref.dtype)


def gated_feed_forward(x, params, *, eps=1e-12, tm=256, ti=2048,
                       matmul_dtype=jnp.bfloat16):
    """x: (B, S, H). params: dict from init_params. Returns (B, S, H)."""
    B, S, H = x.shape
    I = params["w_int"].shape[1]
    T = B * S

    # --- token tiling: multiple of 16 (bf16 sublane packing), pad T if needed.
    sub = 16
    tm = _round_up(max(sub, min(tm, _round_up(T, sub))), sub)
    T_pad = _round_up(T, tm)

    # --- intermediate chunking (bounds VMEM regardless of I). Fall back to the
    #     fully-resident-weights layout when I does not chunk cleanly.
    ti = min(ti, I)
    if I % ti != 0 or (ti != I and ti % 128 != 0):
        ti = I
    nI = I // ti
    chunked = nI > 1

    x2 = x.reshape(T, H)
    if T_pad != T:
        x2 = jnp.pad(x2, ((0, T_pad - T), (0, 0)))

    # --- fused, chunk-interleaved up-projection: columns [int_k | gate_k].
    w_up = jnp.stack(
        [params["w_int"].reshape(H, nI, ti), params["w_gate"].reshape(H, nI, ti)],
        axis=2).reshape(H, 2 * I).astype(matmul_dtype)
    b_up = jnp.stack(
        [params["b_int"].reshape(nI, ti), params["b_gate"].reshape(nI, ti)],
        axis=1).reshape(1, 2 * I).astype(jnp.float32)
    w_out = params["w_out"].astype(matmul_dtype)               # (I, H)
    b_out = params["b_out"].reshape(1, H).astype(jnp.float32)
    gamma = params["ln_gamma"].reshape(1, H).astype(jnp.float32)
    beta = params["ln_beta"].reshape(1, H).astype(jnp.float32)

    # --- explicit VMEM budget (double-buffered tiles + weight chunks + scratch).
    #     (For v7x at transformer scale, shrink ti so this stays under ~56 MiB.)
    xb = jnp.dtype(x.dtype).itemsize
    mb = jnp.dtype(matmul_dtype).itemsize
    est = (2 * tm * H * xb                       # x tiles
           + 2 * tm * H * xb                     # output tiles
           + 2 * (H * 2 * ti + ti * H) * mb      # up/down weight chunk buffers
           + 2 * (2 * ti + 3 * H) * 4            # bias / LN rows
           + tm * H * 4                          # fp32 accumulator scratch
           + 6 * tm * 2 * ti * 4)                # live fp32 intermediates
    vmem_limit = int(min(100 * 2**20, max(32 * 2**20, est + (4 << 20))))

    def _build(single_buffer_constants):
        def _spec(shape, index_map, *, constant):
            if single_buffer_constants and constant:
                # grid-constant operand: double buffering is pure VMEM waste.
                return pl.BlockSpec(shape, index_map, pipeline_mode=pl.Buffered(1))
            return pl.BlockSpec(shape, index_map)

        if chunked:
            kernel = functools.partial(_ffn_kernel_chunked, eps=eps, ti=ti)
            grid = (T_pad // tm, nI)              # tokens parallel, I reduction last
            xmap = lambda i, k: (i, 0)
            cmap = lambda i, k: (0, 0)
            in_specs = [
                pl.BlockSpec((tm, H), xmap),                              # x
                pl.BlockSpec((H, 2 * ti), lambda i, k: (0, k)),           # W_up chunk
                pl.BlockSpec((1, 2 * ti), lambda i, k: (0, k)),           # b_up chunk
                pl.BlockSpec((ti, H), lambda i, k: (k, 0)),               # W_out chunk
                _spec((1, H), cmap, constant=True),                       # b_out
                _spec((1, H), cmap, constant=True),                       # gamma
                _spec((1, H), cmap, constant=True),                       # beta
            ]
            out_specs = pl.BlockSpec((tm, H), xmap)
            scratch = [pltpu.VMEM((tm, H), jnp.float32)]
            dims = ("parallel", "arbitrary")
        else:
            kernel = functools.partial(_ffn_kernel_resident, eps=eps, ti=ti)
            grid = (T_pad // tm,)
            xmap = lambda i: (i, 0)
            cmap = lambda i: (0, 0)
            in_specs = [
                pl.BlockSpec((tm, H), xmap),                              # x
                _spec((H, 2 * ti), cmap, constant=True),                  # W_up
                _spec((1, 2 * ti), cmap, constant=True),                  # b_up
                _spec((ti, H), cmap, constant=True),                      # W_out
                _spec((1, H), cmap, constant=True),                       # b_out
                _spec((1, H), cmap, constant=True),                       # gamma
                _spec((1, H), cmap, constant=True),                       # beta
            ]
            out_specs = pl.BlockSpec((tm, H), xmap)
            scratch = []
            dims = ("parallel",)

        return pl.pallas_call(
            kernel,
            out_shape=jax.ShapeDtypeStruct((T_pad, H), x.dtype),
            grid_spec=pltpu.PrefetchScalarGridSpec(
                num_scalar_prefetch=0,
                grid=grid,
                in_specs=in_specs,
                out_specs=out_specs,
                scratch_shapes=scratch,
            ),
            compiler_params=pltpu.CompilerParams(
                dimension_semantics=dims,
                vmem_limit_bytes=vmem_limit,
            ),
        )

    args = (x2, w_up, b_up, w_out, b_out, gamma, beta)
    try:
        out = jax.block_until_ready(_build(True)(*args))
    except Exception:
        # pipeline_mode=pl.Buffered(1) not supported by this jax build; fall
        # back to default double-buffered pipelining (correctness unaffected).
        out = _build(False)(*args)

    return out[:T].reshape(B, S, H)


def init_params(key, hidden_size, intermediate_size):
    ks = jax.random.split(key, 6)
    scale_h = 1.0 / math.sqrt(hidden_size)
    scale_i = 1.0 / math.sqrt(intermediate_size)
    return {
        # stored as (in, out) so the kernel does x @ W (== torch x @ W.T)
        "w_int": jax.random.uniform(ks[0], (hidden_size, intermediate_size),
                                    jnp.float32, -scale_h, scale_h),
        "b_int": jax.random.uniform(ks[1], (intermediate_size,),
                                    jnp.float32, -scale_h, scale_h),
        "w_gate": jax.random.uniform(ks[2], (hidden_size, intermediate_size),
                                     jnp.float32, -scale_h, scale_h),
        "b_gate": jax.random.uniform(ks[3], (intermediate_size,),
                                     jnp.float32, -scale_h, scale_h),
        "w_out": jax.random.uniform(ks[4], (intermediate_size, hidden_size),
                                    jnp.float32, -scale_i, scale_i),
        "b_out": jax.random.uniform(ks[5], (hidden_size,),
                                    jnp.float32, -scale_i, scale_i),
        "ln_gamma": jnp.ones((hidden_size,), jnp.float32),
        "ln_beta": jnp.zeros((hidden_size,), jnp.float32),
    }


def _reference(x, p, eps=1e-12, matmul_dtype=jnp.bfloat16):
    """Pure-JAX reference with the same dtype policy (bf16 matmuls, fp32 rest)."""
    x32 = x.astype(jnp.float32)
    xm = x32.astype(matmul_dtype)
    inter = jnp.dot(xm, p["w_int"].astype(matmul_dtype),
                    preferred_element_type=jnp.float32) + p["b_int"]
    gate = jnp.dot(xm, p["w_gate"].astype(matmul_dtype),
                   preferred_element_type=jnp.float32) + p["b_gate"]
    act = 0.5 * inter * (1.0 + lax.erf(inter * _INV_SQRT2))
    gated = act * jax.nn.sigmoid(gate)
    out = jnp.dot(gated.astype(matmul_dtype), p["w_out"].astype(matmul_dtype),
                  preferred_element_type=jnp.float32) + p["b_out"]
    h = x32 + out
    mean = jnp.mean(h, -1, keepdims=True)
    var = jnp.mean((h - mean) ** 2, -1, keepdims=True)
    return (h - mean) * lax.rsqrt(var + eps) * p["ln_gamma"] + p["ln_beta"]


if __name__ == "__main__":
    # Small but lane-dense shapes (H multiple of 128) so the kernel layout is
    # representative of real configs.
    B, S, H, I = 2, 8, 128, 256
    key = jax.random.PRNGKey(0)
    kx, kp = jax.random.split(key)
    x = jax.random.normal(kx, (B, S, H), jnp.float32)
    params = init_params(kp, H, I)

    y_ref = _reference(x, params)

    # Resident-weights path (nI == 1, single-pass kernel).
    y = gated_feed_forward(x, params)
    y = jax.block_until_ready(y)
    assert y.shape == x.shape
    err = jnp.max(jnp.abs(y - y_ref))
    assert jnp.allclose(y, y_ref, atol=2e-3, rtol=2e-3), \
        f"mismatch vs reference (max abs err {err})"

    # I-chunked accumulation path (exercises the v7x-targeted reduction axis).
    y2 = gated_feed_forward(x, params, ti=128)
    y2 = jax.block_until_ready(y2)
    err2 = jnp.max(jnp.abs(y2 - y_ref))
    assert jnp.allclose(y2, y_ref, atol=2e-3, rtol=2e-3), \
        f"chunked-path mismatch vs reference (max abs err {err2})"

    print("KERNEL_OK")
</pallas_src>

<mosaic_0001>
module attributes {stable_mosaic.version = 11 : i64} {
  func.func @_ffn_kernel_resident(%arg0: i32, %arg1: memref<16x128xf32, #tpu.memory_space<vmem>>, %arg2: memref<128x512xbf16, #tpu.memory_space<vmem>>, %arg3: memref<1x512xf32, #tpu.memory_space<vmem>>, %arg4: memref<256x128xbf16, #tpu.memory_space<vmem>>, %arg5: memref<1x128xf32, #tpu.memory_space<vmem>>, %arg6: memref<1x128xf32, #tpu.memory_space<vmem>>, %arg7: memref<1x128xf32, #tpu.memory_space<vmem>>, %arg8: memref<16x128xf32, #tpu.memory_space<vmem>>) attributes {dimension_semantics = [#tpu.dimension_semantics<parallel>], iteration_bounds = array<i64: 1>, scalar_prefetch = 0 : i64, scratch_operands = 0 : i64, tpu.core_type = #tpu.core_type<tc>, window_params = [{transform_indices = @transform_0, window_bounds = array<i64: 16, 128>}, {pipeline_mode = #tpu.pipeline_mode<synchronous>, transform_indices = @transform_1, window_bounds = array<i64: 128, 512>}, {pipeline_mode = #tpu.pipeline_mode<synchronous>, transform_indices = @transform_2, window_bounds = array<i64: 1, 512>}, {pipeline_mode = #tpu.pipeline_mode<synchronous>, transform_indices = @transform_3, window_bounds = array<i64: 256, 128>}, {pipeline_mode = #tpu.pipeline_mode<synchronous>, transform_indices = @transform_4, window_bounds = array<i64: 1, 128>}, {pipeline_mode = #tpu.pipeline_mode<synchronous>, transform_indices = @transform_5, window_bounds = array<i64: 1, 128>}, {pipeline_mode = #tpu.pipeline_mode<synchronous>, transform_indices = @transform_6, window_bounds = array<i64: 1, 128>}, {transform_indices = @transform_7, window_bounds = array<i64: 16, 128>}]} {
    %c0 = arith.constant 0 : index
    %c0_0 = arith.constant 0 : index
    %0 = vector.load %arg1[%c0, %c0_0] : memref<16x128xf32, #tpu.memory_space<vmem>>, vector<16x128xf32>
    %1 = arith.truncf %0 : vector<16x128xf32> to vector<16x128xbf16>
    %c0_1 = arith.constant 0 : index
    %c0_2 = arith.constant 0 : index
    %2 = vector.load %arg2[%c0_1, %c0_2] : memref<128x512xbf16, #tpu.memory_space<vmem>>, vector<128x512xbf16>
    %cst = arith.constant dense<0.000000e+00> : vector<16x512xf32>
    %3 = tpu.matmul %1, %2, %cst {dimension_numbers = #tpu.dot_dimension_numbers<[1], [0], [0], [1], [0, 0, 1, 1], [], []>} : vector<16x128xbf16>, vector<128x512xbf16>, vector<16x512xf32> -> vector<16x512xf32>
    %c0_3 = arith.constant 0 : index
    %c0_4 = arith.constant 0 : index
    %4 = vector.load %arg3[%c0_3, %c0_4] : memref<1x512xf32, #tpu.memory_space<vmem>>, vector<1x512xf32>
    %5 = vector.broadcast %4 : vector<1x512xf32> to vector<16x512xf32>
    %6 = arith.addf %3, %5 : vector<16x512xf32>
    %7 = vector.extract_strided_slice %6 {offsets = [0, 0], sizes = [16, 256], strides = [1, 1]} : vector<16x512xf32> to vector<16x256xf32>
    %8 = vector.extract_strided_slice %6 {offsets = [0, 256], sizes = [16, 256], strides = [1, 1]} : vector<16x512xf32> to vector<16x256xf32>
    %cst_5 = arith.constant 5.000000e-01 : f32
    %9 = vector.broadcast %cst_5 : f32 to vector<16x256xf32>
    %10 = arith.mulf %9, %7 : vector<16x256xf32>
    %cst_6 = arith.constant 0.707106769 : f32
    %11 = vector.broadcast %cst_6 : f32 to vector<16x256xf32>
    %12 = arith.mulf %7, %11 : vector<16x256xf32>
    %13 = math.erf %12 : vector<16x256xf32>
    %cst_7 = arith.constant 1.000000e+00 : f32
    %14 = vector.broadcast %cst_7 : f32 to vector<16x256xf32>
    %15 = arith.addf %14, %13 : vector<16x256xf32>
    %16 = arith.mulf %10, %15 : vector<16x256xf32>
    %17 = arith.negf %8 : vector<16x256xf32>
    %18 = math.exp %17 : vector<16x256xf32>
    %cst_8 = arith.constant 1.000000e+00 : f32
    %19 = vector.broadcast %cst_8 : f32 to vector<16x256xf32>
    %20 = arith.addf %19, %18 : vector<16x256xf32>
    %21 = arith.divf %19, %20 : vector<16x256xf32>
    %22 = arith.mulf %16, %21 : vector<16x256xf32>
    %23 = arith.truncf %22 : vector<16x256xf32> to vector<16x256xbf16>
    %c0_9 = arith.constant 0 : index
    %c0_10 = arith.constant 0 : index
    %24 = vector.load %arg4[%c0_9, %c0_10] : memref<256x128xbf16, #tpu.memory_space<vmem>>, vector<256x128xbf16>
    %cst_11 = arith.constant dense<0.000000e+00> : vector<16x128xf32>
    %25 = tpu.matmul %23, %24, %cst_11 {dimension_numbers = #tpu.dot_dimension_numbers<[1], [0], [0], [1], [0, 0, 1, 1], [], []>} : vector<16x256xbf16>, vector<256x128xbf16>, vector<16x128xf32> -> vector<16x128xf32>
    %26 = arith.addf %0, %25 : vector<16x128xf32>
    %c0_12 = arith.constant 0 : index
    %c0_13 = arith.constant 0 : index
    %27 = vector.load %arg5[%c0_12, %c0_13] : memref<1x128xf32, #tpu.memory_space<vmem>>, vector<1x128xf32>
    %28 = vector.broadcast %27 : vector<1x128xf32> to vector<16x128xf32>
    %29 = arith.addf %26, %28 : vector<16x128xf32>
    %c0_14 = arith.constant 0 : index
    %c0_15 = arith.constant 0 : index
    %30 = vector.load %arg6[%c0_14, %c0_15] : memref<1x128xf32, #tpu.memory_space<vmem>>, vector<1x128xf32>
    %c0_16 = arith.constant 0 : index
    %c0_17 = arith.constant 0 : index
    %31 = vector.load %arg7[%c0_16, %c0_17] : memref<1x128xf32, #tpu.memory_space<vmem>>, vector<1x128xf32>
    %cst_18 = arith.constant dense<0.000000e+00> : vector<16xf32>
    %32 = vector.multi_reduction <add>, %29, %cst_18 [1] : vector<16x128xf32> to vector<16xf32>
    %33 = vector.shape_cast %32 : vector<16xf32> to vector<16x1xf32>
    %cst_19 = arith.constant 1.280000e+02 : f32
    %34 = vector.broadcast %cst_19 : f32 to vector<16x1xf32>
    %35 = arith.divf %33, %34 : vector<16x1xf32>
    %36 = vector.broadcast %35 : vector<16x1xf32> to vector<16x128xf32>
    %37 = arith.subf %29, %36 : vector<16x128xf32>
    %38 = arith.mulf %37, %37 : vector<16x128xf32>
    %cst_20 = arith.constant dense<0.000000e+00> : vector<16xf32>
    %39 = vector.multi_reduction <add>, %38, %cst_20 [1] : vector<16x128xf32> to vector<16xf32>
    %40 = vector.shape_cast %39 : vector<16xf32> to vector<16x1xf32>
    %cst_21 = arith.constant 1.280000e+02 : f32
    %41 = vector.broadcast %cst_21 : f32 to vector<16x1xf32>
    %42 = arith.divf %40, %41 : vector<16x1xf32>
    %43 = vector.broadcast %35 : vector<16x1xf32> to vector<16x128xf32>
    %44 = arith.subf %29, %43 : vector<16x128xf32>
    %cst_22 = arith.constant 9.99999996E-13 : f32
    %45 = vector.broadcast %cst_22 : f32 to vector<16x1xf32>
    %46 = arith.addf %42, %45 : vector<16x1xf32>
    %47 = math.rsqrt %46 : vector<16x1xf32>
    %48 = vector.broadcast %47 : vector<16x1xf32> to vector<16x128xf32>
    %49 = arith.mulf %44, %48 : vector<16x128xf32>
    %50 = vector.broadcast %30 : vector<1x128xf32> to vector<16x128xf32>
    %51 = arith.mulf %49, %50 : vector<16x128xf32>
    %52 = vector.broadcast %31 : vector<1x128xf32> to vector<16x128xf32>
    %53 = arith.addf %51, %52 : vector<16x128xf32>
    %c0_23 = arith.constant 0 : index
    %c0_24 = arith.constant 0 : index
    %54 = vector.load %arg8[%c0_23, %c0_24] : memref<16x128xf32, #tpu.memory_space<vmem>>, vector<16x128xf32>
    tpu.vector_store %arg8[%c0_23, %c0_24], %53 {strides = array<i32>} : memref<16x128xf32, #tpu.memory_space<vmem>>, vector<16x128xf32>,
    return
  }
  func.func @transform_0(%arg0: i32) -> (i32, i32) {
    %c0_i32 = arith.constant 0 : i32
    %c0_i32_0 = arith.constant 0 : i32
    return %arg0, %c0_i32 : i32, i32
  }
  func.func @transform_1(%arg0: i32) -> (i32, i32) {
    %c0_i32 = arith.constant 0 : i32
    %c0_i32_0 = arith.constant 0 : i32
    %c0_i32_1 = arith.constant 0 : i32
    return %c0_i32, %c0_i32_0 : i32, i32
  }
  func.func @transform_2(%arg0: i32) -> (i32, i32) {
    %c0_i32 = arith.constant 0 : i32
    %c0_i32_0 = arith.constant 0 : i32
    %c0_i32_1 = arith.constant 0 : i32
    return %c0_i32, %c0_i32_0 : i32, i32
  }
  func.func @transform_3(%arg0: i32) -> (i32, i32) {
    %c0_i32 = arith.constant 0 : i32
    %c0_i32_0 = arith.constant 0 : i32
    %c0_i32_1 = arith.constant 0 : i32
    return %c0_i32, %c0_i32_0 : i32, i32
  }
  func.func @transform_4(%arg0: i32) -> (i32, i32) {
    %c0_i32 = arith.constant 0 : i32
    %c0_i32_0 = arith.constant 0 : i32
    %c0_i32_1 = arith.constant 0 : i32
    return %c0_i32, %c0_i32_0 : i32, i32
  }
  func.func @transform_5(%arg0: i32) -> (i32, i32) {
    %c0_i32 = arith.constant 0 : i32
    %c0_i32_0 = arith.constant 0 : i32
    %c0_i32_1 = arith.constant 0 : i32
    return %c0_i32, %c0_i32_0 : i32, i32
  }
  func.func @transform_6(%arg0: i32) -> (i32, i32) {
    %c0_i32 = arith.constant 0 : i32
    %c0_i32_0 = arith.constant 0 : i32
    %c0_i32_1 = arith.constant 0 : i32
    return %c0_i32, %c0_i32_0 : i32, i32
  }
  func.func @transform_7(%arg0: i32) -> (i32, i32) {
    %c0_i32 = arith.constant 0 : i32
    %c0_i32_0 = arith.constant 0 : i32
    return %arg0, %c0_i32 : i32, i32
  }
}

module attributes {stable_mosaic.version = 11 : i64} {
  func.func @_ffn_kernel_resident(%arg0: i32, %arg1: memref<16x128xf32, #tpu.memory_space<vmem>>, %arg2: memref<128x512xbf16, #tpu.memory_space<vmem>>, %arg3: memref<1x512xf32, #tpu.memory_space<vmem>>, %arg4: memref<256x128xbf16, #tpu.memory_space<vmem>>, %arg5: memref<1x128xf32, #tpu.memory_space<vmem>>, %arg6: memref<1x128xf32, #tpu.memory_space<vmem>>, %arg7: memref<1x128xf32, #tpu.memory_space<vmem>>, %arg8: memref<16x128xf32, #tpu.memory_space<vmem>>) attributes {dimension_semantics = [#tpu.dimension_semantics<parallel>], iteration_bounds = array<i64: 1>, scalar_prefetch = 0 : i64, scratch_operands = 0 : i64, tpu.core_type = #tpu.core_type<tc>, window_params = [{transform_indices = @transform_0, window_bounds = array<i64: 16, 128>}, {pipeline_mode = #tpu.pipeline_mode<synchronous>, transform_indices = @transform_1, window_bounds = array<i64: 128, 512>}, {pipeline_mode = #tpu.pipeline_mode<synchronous>, transform_indices = @transform_2, window_bounds = array<i64: 1, 512>}, {pipeline_mode = #tpu.pipeline_mode<synchronous>, transform_indices = @transform_3, window_bounds = array<i64: 256, 128>}, {pipeline_mode = #tpu.pipeline_mode<synchronous>, transform_indices = @transform_4, window_bounds = array<i64: 1, 128>}, {pipeline_mode = #tpu.pipeline_mode<synchronous>, transform_indices = @transform_5, window_bounds = array<i64: 1, 128>}, {pipeline_mode = #tpu.pipeline_mode<synchronous>, transform_indices = @transform_6, window_bounds = array<i64: 1, 128>}, {transform_indices = @transform_7, window_bounds = array<i64: 16, 128>}]} {
    %c0 = arith.constant 0 : index
    %c0_0 = arith.constant 0 : index
    %0 = vector.load %arg1[%c0, %c0_0] : memref<16x128xf32, #tpu.memory_space<vmem>>, vector<16x128xf32>
    %1 = arith.truncf %0 : vector<16x128xf32> to vector<16x128xbf16>
    %c0_1 = arith.constant 0 : index
    %c0_2 = arith.constant 0 : index
    %2 = vector.load %arg2[%c0_1, %c0_2] : memref<128x512xbf16, #tpu.memory_space<vmem>>, vector<128x512xbf16>
    %cst = arith.constant dense<0.000000e+00> : vector<16x512xf32>
    %3 = tpu.matmul %1, %2, %cst {dimension_numbers = #tpu.dot_dimension_numbers<[1], [0], [0], [1], [0, 0, 1, 1], [], []>} : vector<16x128xbf16>, vector<128x512xbf16>, vector<16x512xf32> -> vector<16x512xf32>
    %c0_3 = arith.constant 0 : index
    %c0_4 = arith.constant 0 : index
    %4 = vector.load %arg3[%c0_3, %c0_4] : memref<1x512xf32, #tpu.memory_space<vmem>>, vector<1x512xf32>
    %5 = vector.broadcast %4 : vector<1x512xf32> to vector<16x512xf32>
    %6 = arith.addf %3, %5 : vector<16x512xf32>
    %7 = vector.extract_strided_slice %6 {offsets = [0, 0], sizes = [16, 256], strides = [1, 1]} : vector<16x512xf32> to vector<16x256xf32>
    %8 = vector.extract_strided_slice %6 {offsets = [0, 256], sizes = [16, 256], strides = [1, 1]} : vector<16x512xf32> to vector<16x256xf32>
    %cst_5 = arith.constant 5.000000e-01 : f32
    %9 = vector.broadcast %cst_5 : f32 to vector<16x256xf32>
    %10 = arith.mulf %9, %7 : vector<16x256xf32>
    %cst_6 = arith.constant 0.707106769 : f32
    %11 = vector.broadcast %cst_6 : f32 to vector<16x256xf32>
    %12 = arith.mulf %7, %11 : vector<16x256xf32>
    %13 = math.erf %12 : vector<16x256xf32>
    %cst_7 = arith.constant 1.000000e+00 : f32
    %14 = vector.broadcast %cst_7 : f32 to vector<16x256xf32>
    %15 = arith.addf %14, %13 : vector<16x256xf32>
    %16 = arith.mulf %10, %15 : vector<16x256xf32>
    %17 = arith.negf %8 : vector<16x256xf32>
    %18 = math.exp %17 : vector<16x256xf32>
    %cst_8 = arith.constant 1.000000e+00 : f32
    %19 = vector.broadcast %cst_8 : f32 to vector<16x256xf32>
    %20 = arith.addf %19, %18 : vector<16x256xf32>
    %21 = arith.divf %19, %20 : vector<16x256xf32>
    %22 = arith.mulf %16, %21 : vector<16x256xf32>
    %23 = arith.truncf %22 : vector<16x256xf32> to vector<16x256xbf16>
    %c0_9 = arith.constant 0 : index
    %c0_10 = arith.constant 0 : index
    %24 = vector.load %arg4[%c0_9, %c0_10] : memref<256x128xbf16, #tpu.memory_space<vmem>>, vector<256x128xbf16>
    %cst_11 = arith.constant dense<0.000000e+00> : vector<16x128xf32>
    %25 = tpu.matmul %23, %24, %cst_11 {dimension_numbers = #tpu.dot_dimension_numbers<[1], [0], [0], [1], [0, 0, 1, 1], [], []>} : vector<16x256xbf16>, vector<256x128xbf16>, vector<16x128xf32> -> vector<16x128xf32>
    %26 = arith.addf %0, %25 : vector<16x128xf32>
    %c0_12 = arith.constant 0 : index
    %c0_13 = arith.constant 0 : index
    %27 = vector.load %arg5[%c0_12, %c0_13] : memref<1x128xf32, #tpu.memory_space<vmem>>, vector<1x128xf32>
    %28 = vector.broadcast %27 : vector<1x128xf32> to vector<16x128xf32>
    %29 = arith.addf %26, %28 : vector<16x128xf32>
    %c0_14 = arith.constant 0 : index
    %c0_15 = arith.constant 0 : index
    %30 = vector.load %arg6[%c0_14, %c0_15] : memref<1x128xf32, #tpu.memory_space<vmem>>, vector<1x128xf32>
    %c0_16 = arith.constant 0 : index
    %c0_17 = arith.constant 0 : index
    %31 = vector.load %arg7[%c0_16, %c0_17] : memref<1x128xf32, #tpu.memory_space<vmem>>, vector<1x128xf32>
    %cst_18 = arith.constant dense<0.000000e+00> : vector<16xf32>
    %32 = vector.multi_reduction <add>, %29, %cst_18 [1] : vector<16x128xf32> to vector<16xf32>
    %33 = vector.shape_cast %32 : vector<16xf32> to vector<16x1xf32>
    %cst_19 = arith.constant 1.280000e+02 : f32
    %34 = vector.broadcast %cst_19 : f32 to vector<16x1xf32>
    %35 = arith.divf %33, %34 : vector<16x1xf32>
    %36 = vector.broadcast %35 : vector<16x1xf32> to vector<16x128xf32>
    %37 = arith.subf %29, %36 : vector<16x128xf32>
    %38 = arith.mulf %37, %37 : vector<16x128xf32>
    %cst_20 = arith.constant dense<0.000000e+00> : vector<16xf32>
    %39 = vector.multi_reduction <add>, %38, %cst_20 [1] : vector<16x128xf32> to vector<16xf32>
    %40 = vector.shape_cast %39 : vector<16xf32> to vector<16x1xf32>
    %cst_21 = arith.constant 1.280000e+02 : f32
    %41 = vector.broadcast %cst_21 : f32 to vector<16x1xf32>
    %42 = arith.divf %40, %41 : vector<16x1xf32>
    %43 = vector.broadcast %35 : vector<16x1xf32> to vector<16x128xf32>
    %44 = arith.subf %29, %43 : vector<16x128xf32>
    %cst_22 = arith.constant 9.99999996E-13 : f32
    %45 = vector.broadcast %cst_22 : f32 to vector<16x1xf32>
    %46 = arith.addf %42, %45 : vector<16x1xf32>
    %47 = math.rsqrt %46 : vector<16x1xf32>
    %48 = vector.broadcast %47 : vector<16x1xf32> to vector<16x128xf32>
    %49 = arith.mulf %44, %48 : vector<16x128xf32>
    %50 = vector.broadcast %30 : vector<1x128xf32> to vector<16x128xf32>
    %51 = arith.mulf %49, %50 : vector<16x128xf32>
    %52 = vector.broadcast %31 : vector<1x128xf32> to vector<16x128xf32>
    %53 = arith.addf %51, %52 : vector<16x128xf32>
    %c0_23 = arith.constant 0 : index
    %c0_24 = arith.constant 0 : index
    %54 = vector.load %arg8[%c0_23, %c0_24] : memref<16x128xf32, #tpu.memory_space<vmem>>, vector<16x128xf32>
    tpu.vector_store %arg8[%c0_23, %c0_24], %53 {strides = array<i32>} : memref<16x128xf32, #tpu.memory_space<vmem>>, vector<16x128xf32>,
    return
  }
  func.func @transform_0(%arg0: i32) -> (i32, i32) {
    %c0_i32 = arith.constant 0 : i32
    %c0_i32_0 = arith.constant 0 : i32
    return %arg0, %c0_i32 : i32, i32
  }
  func.func @transform_1(%arg0: i32) -> (i32, i32) {
    %c0_i32 = arith.constant 0 : i32
    %c0_i32_0 = arith.constant 0 : i32
    %c0_i32_1 = arith.constant 0 : i32
    return %c0_i32, %c0_i32_0 : i32, i32
  }
  func.func @transform_2(%arg0: i32) -> (i32, i32) {
    %c0_i32 = arith.constant 0 : i32
    %c0_i32_0 = arith.constant 0 : i32
    %c0_i32_1 = arith.constant 0 : i32
    return %c0_i32, %c0_i32_0 : i32, i32
  }
  func.func @transform_3(%arg0: i32) -> (i32, i32) {
    %c0_i32 = arith.constant 0 : i32
    %c0_i32_0 = arith.constant 0 : i32
    %c0_i32_1 = arith.constant 0 : i32
    return %c0_i32, %c0_i32_0 : i32, i32
  }
  func.func @transform_4(%arg0: i32) -> (i32, i32) {
    %c0_i32 = arith.constant 0 : i32
    %c0_i32_0 = arith.constant 0 : i32
    %c0_i32_1 = arith.constant 0 : i32
    return %c0_i32, %c0_i32_0 : i32, i32
  }
  func.func @transform_5(%arg0: i32) -> (i32, i32) {
    %c0_i32 = arith.constant 0 : i32
    %c0_i32_0 = arith.constant 0 : i32
    %c0_i32_1 = arith.constant 0 : i32
    return %c0_i32, %c0_i32_0 : i32, i32
  }
  func.func @transform_6(%arg0: i32) -> (i32, i32) {
    %c0_i32 = arith.constant 0 : i32
    %c0_i32_0 = arith.constant 0 : i32
    %c0_i32_1 = arith.constant 0 : i32
    return %c0_i32, %c0_i32_0 : i32, i32
  }
  func.func @transform_7(%arg0: i32) -> (i32, i32) {
    %c0_i32 = arith.constant 0 : i32
    %c0_i32_0 = arith.constant 0 : i32
    return %arg0, %c0_i32 : i32, i32
  }
}

</mosaic_0001>

<llo_original>
// kernel: tpu_custom_call.1
$region0: #{tpu_custom_call.1}
  #allocation0 [shape = 'u32[]', space=smem, size = 0x4, offset = 0x4, fixed_abs, tag = 'smem constant byte address 0x4 - core index']
  #allocation1 [shape = 'u32[144,128]{1,0:T(1,128)}', space=vmem, size = 0x12000, scoped, tag = 'internal scratch']
  %s0 = inlined_call_operand.hbm [shape: f32[16,128], index: 0, kind: input, shape index: {}]
  %s1 = inlined_call_operand.hbm [shape: bf16[128,512], index: 1, kind: input, shape index: {}]
  %s2 = inlined_call_operand.hbm [shape: f32[1,512], index: 2, kind: input, shape index: {}]
  %s3 = inlined_call_operand.hbm [shape: bf16[256,128], index: 3, kind: input, shape index: {}]
  %s4 = inlined_call_operand.vmem [shape: f32[1,128], index: 4, kind: input, shape index: {}]
  %s5 = inlined_call_operand.vmem [shape: f32[1,128], index: 5, kind: input, shape index: {}]
  %s6 = inlined_call_operand.vmem [shape: f32[1,128], index: 6, kind: input, shape index: {}]
  %s7 = inlined_call_operand.hbm [shape: f32[16,128], index: 7, kind: output, shape index: {}]
  %s8 = sld [smem:[#allocation0]]
  $region54: #{tpu_custom_call.1} parent=0
    _
  %s10 = ssub.s32 1, %s8
  %s11 = scalar_select 0, %s10, %s8
  $region1: #{tpu_custom_call.1} parent=0
    #allocation2 [shape = 'u8[8192]{0}', space=vmem, size = 0x2000, scoped, tag = 'input window, operand 0, single buffered']
    #allocation3 [shape = 's32[1]{0}', space=sflag, size = 0x4, scoped, tag = 'scoped memory for tpu_custom_call.1']
    #allocation4 [shape = 's32[1]{0}', space=sflag, size = 0x4, scoped, tag = 'scoped memory for tpu_custom_call.1']
    #allocation5 [shape = 'u8[131072]{0}', space=vmem, size = 0x20000, scoped, tag = 'input window, operand 1, single buffered']
    #allocation6 [shape = 's32[1]{0}', space=sflag, size = 0x4, scoped, tag = 'scoped memory for tpu_custom_call.1']
    #allocation7 [shape = 'u8[2048]{0}', space=vmem, size = 0x800, scoped, tag = 'input window, operand 2, single buffered']
    #allocation8 [shape = 'u8[65536]{0}', space=vmem, size = 0x10000, scoped, tag = 'input window, operand 3, single buffered']
    #allocation9 [shape = 's32[1]{0}', space=sflag, size = 0x4, scoped, tag = 'scoped memory for tpu_custom_call.1']
    #allocation10 [shape = 'u8[8192]{0}', space=vmem, size = 0x2000, scoped, tag = 'output window, operand 0, single buffered']
    %12 = vsyncpa [#allocation3], 0
    %13 = vsyncpa [#allocation6], 0
    %14 = vsyncpa [#allocation9], 0
    %15 = vsyncpa [#allocation4], 0
    // Predicated region
    $region2: #{tpu_custom_call.1} parent=1 // pred_check
      _
    $region3: #{tpu_custom_call.1} parent=1 // pred_check_branch
      %17 = sbr.rel (0) target = $region5
    $region4: #{tpu_custom_call.1} parent=1 // pred_region
      %s19 = ssub.s32 256, 256
      %20 = vsyncadd [#allocation3], %s19
      %s21 = sshll.u32 [#allocation2], 4
      %s22 = int_to_ptr.vmem [resolvable:$true] %s21
      %27 = dma.hbm_to_vmem [thread:$0]  %s0, 256, %s22, [#allocation3], 128, 128, 8
    $region5: #{tpu_custom_call.1} parent=1 // pred_fallthru
      _
    // Predicated region
    $region6: #{tpu_custom_call.1} parent=1 // pred_check
      _
    $region7: #{tpu_custom_call.1} parent=1 // pred_check_branch
      %29 = sbr.rel (0) target = $region9
    $region8: #{tpu_custom_call.1} parent=1 // pred_region
      %s31 = ssub.s32 4096, 4096
      %32 = vsyncadd [#allocation6], %s31
      %s33 = sshll.u32 [#allocation5], 4
      %s34 = int_to_ptr.vmem [resolvable:$true] %s33
      %39 = dma.hbm_to_vmem [thread:$0]  %s1, 4096, %s34, [#allocation6], 256, 256, 16
    $region9: #{tpu_custom_call.1} parent=1 // pred_fallthru
      _
    // Predicated region
    $region10: #{tpu_custom_call.1} parent=1 // pred_check
      _
    $region11: #{tpu_custom_call.1} parent=1 // pred_check_branch
      %41 = sbr.rel (0) target = $region13
    $region12: #{tpu_custom_call.1} parent=1 // pred_region
      %s43 = ssub.s32 64, 64
      %44 = vsyncadd [#allocation6], %s43
      %s46 = sshll.u32 [#allocation7], 4
      %s47 = int_to_ptr.vmem [resolvable:$true] %s46
      %49 = dma.hbm_to_vmem [thread:$0]  %s2, 64, %s47, [#allocation6]
    $region13: #{tpu_custom_call.1} parent=1 // pred_fallthru
      _
    // Predicated region
    $region14: #{tpu_custom_call.1} parent=1 // pred_check
      _
    $region15: #{tpu_custom_call.1} parent=1 // pred_check_branch
      %51 = sbr.rel (0) target = $region17
    $region16: #{tpu_custom_call.1} parent=1 // pred_region
      %s53 = ssub.s32 2048, 2048
      %54 = vsyncadd [#allocation9], %s53
      %s55 = sshll.u32 [#allocation8], 4
      %s56 = int_to_ptr.vmem [resolvable:$true] %s55
      %61 = dma.hbm_to_vmem [thread:$0]  %s3, 2048, %s56, [#allocation9], 64, 64, 4
    $region17: #{tpu_custom_call.1} parent=1 // pred_fallthru
      _
    // Predicated region
    $region18: #{tpu_custom_call.1} parent=1 // pred_check
      _
    $region19: #{tpu_custom_call.1} parent=1 // pred_check_branch
      %63 = sbr.rel (0) target = $region21
    $region20: #{tpu_custom_call.1} parent=1 // pred_region
      _
    $region21: #{tpu_custom_call.1} parent=1 // pred_fallthru
      _
    // Predicated region
    $region22: #{tpu_custom_call.1} parent=1 // pred_check
      _
    $region23: #{tpu_custom_call.1} parent=1 // pred_check_branch
      %65 = sbr.rel (0) target = $region25
    $region24: #{tpu_custom_call.1} parent=1 // pred_region
      _
    $region25: #{tpu_custom_call.1} parent=1 // pred_fallthru
      _
    // Predicated region
    $region26: #{tpu_custom_call.1} parent=1 // pred_check
      _
    $region27: #{tpu_custom_call.1} parent=1 // pred_check_branch
      %67 = sbr.rel (0) target = $region29
    $region28: #{tpu_custom_call.1} parent=1 // pred_region
      _
    $region29: #{tpu_custom_call.1} parent=1 // pred_fallthru
      _
    // Predicated region
    $region30: #{tpu_custom_call.1} parent=1 // pred_check
      _
    $region31: #{tpu_custom_call.1} parent=1 // pred_check_branch
      %69 = sbr.rel (0) target = $region33
    $region32: #{tpu_custom_call.1} parent=1 // pred_region
      %70 = dma.done [#allocation3], 256
    $region33: #{tpu_custom_call.1} parent=1 // pred_fallthru
      _
    // Predicated region
    $region34: #{tpu_custom_call.1} parent=1 // pred_check
      _
    $region35: #{tpu_custom_call.1} parent=1 // pred_check_branch
      %72 = sbr.rel (0) target = $region37
    $region36: #{tpu_custom_call.1} parent=1 // pred_region
      %73 = dma.done [#allocation6], 4096
    $region37: #{tpu_custom_call.1} parent=1 // pred_fallthru
      _
    // Predicated region
    $region38: #{tpu_custom_call.1} parent=1 // pred_check
      _
    $region39: #{tpu_custom_call.1} parent=1 // pred_check_branch
      %75 = sbr.rel (0) target = $region41
    $region40: #{tpu_custom_call.1} parent=1 // pred_region
      %76 = dma.done [#allocation6], 64
    $region41: #{tpu_custom_call.1} parent=1 // pred_fallthru
      _
    // Predicated region
    $region42: #{tpu_custom_call.1} parent=1 // pred_check
      _
    $region43: #{tpu_custom_call.1} parent=1 // pred_check_branch
      %78 = sbr.rel (0) target = $region45
    $region44: #{tpu_custom_call.1} parent=1 // pred_region
      %79 = dma.done [#allocation9], 2048
    $region45: #{tpu_custom_call.1} parent=1 // pred_fallthru
      _
    %v81 = vld [vmem:[#allocation2] sm:$0xff]
    %v82 = vld [vmem:[#allocation2 + $0x8] sm:$0xff]
    %v83 = vpack.c.bf16 %v82, %v81
    %v84 = vld [vmem:[#allocation5] sm:$0xff]
    %v85 = vld [vmem:[#allocation5 + $0x8] sm:$0xff]
    %v86 = vld [vmem:[#allocation5 + $0x10] sm:$0xff]
    %v87 = vld [vmem:[#allocation5 + $0x18] sm:$0xff]
    %v88 = vld [vmem:[#allocation5 + $0x20] sm:$0xff]
    %v89 = vld [vmem:[#allocation5 + $0x28] sm:$0xff]
    %v90 = vld [vmem:[#allocation5 + $0x30] sm:$0xff]
    %v91 = vld [vmem:[#allocation5 + $0x38] sm:$0xff]
    %v92 = vld [vmem:[#allocation5 + $0x40] sm:$0xff]
    %v93 = vld [vmem:[#allocation5 + $0x48] sm:$0xff]
    %v94 = vld [vmem:[#allocation5 + $0x50] sm:$0xff]
    %v95 = vld [vmem:[#allocation5 + $0x58] sm:$0xff]
    %v96 = vld [vmem:[#allocation5 + $0x60] sm:$0xff]
    %v97 = vld [vmem:[#allocation5 + $0x68] sm:$0xff]
    %v98 = vld [vmem:[#allocation5 + $0x70] sm:$0xff]
    %v99 = vld [vmem:[#allocation5 + $0x78] sm:$0xff]
    %v100 = vld [vmem:[#allocation5 + $0x80] sm:$0xff]
    %v101 = vld [vmem:[#allocation5 + $0x88] sm:$0xff]
    %v102 = vld [vmem:[#allocation5 + $0x90] sm:$0xff]
    %v103 = vld [vmem:[#allocation5 + $0x98] sm:$0xff]
    %v104 = vld [vmem:[#allocation5 + $0xa0] sm:$0xff]
    %v105 = vld [vmem:[#allocation5 + $0xa8] sm:$0xff]
    %v106 = vld [vmem:[#allocation5 + $0xb0] sm:$0xff]
    %v107 = vld [vmem:[#allocation5 + $0xb8] sm:$0xff]
    %v108 = vld [vmem:[#allocation5 + $0xc0] sm:$0xff]
    %v109 = vld [vmem:[#allocation5 + $0xc8] sm:$0xff]
    %v110 = vld [vmem:[#allocation5 + $0xd0] sm:$0xff]
    %v111 = vld [vmem:[#allocation5 + $0xd8] sm:$0xff]
    %v112 = vld [vmem:[#allocation5 + $0xe0] sm:$0xff]
    %v113 = vld [vmem:[#allocation5 + $0xe8] sm:$0xff]
    %v114 = vld [vmem:[#allocation5 + $0xf0] sm:$0xff]
    %v115 = vld [vmem:[#allocation5 + $0xf8] sm:$0xff]
    %v116 = vld [vmem:[#allocation7] sm:$0xf]
    %v118 = vlaneseq
    %v119 = vshrl.u32 %v118, 7
    %v120 = vsub.s32 0, %v119
    %v121 = vrot.slane %v116, %v120
    %v122 = vlaneseq
    %v123 = vshrl.u32 %v122, 7
    %v124 = vsub.s32 1, %v123
    %v125 = vrot.slane %v116, %v124
    %v126 = vlaneseq
    %v127 = vshrl.u32 %v126, 7
    %v128 = vsub.s32 2, %v127
    %v129 = vrot.slane %v116, %v128
    %v130 = vlaneseq
    %v131 = vshrl.u32 %v130, 7
    %v132 = vsub.s32 3, %v131
    %v133 = vrot.slane %v116, %v132
    %v170 = vunpack.c.l.b16 %v84
    %v171 = vunpack.c.h.b16 %v84
    %v172 = vunpack.c.l.b16 %v85
    %v173 = vunpack.c.h.b16 %v85
    %v174 = vunpack.c.l.b16 %v86
    %v175 = vunpack.c.h.b16 %v86
    %v176 = vunpack.c.l.b16 %v87
    %v177 = vunpack.c.h.b16 %v87
    %v178 = vunpack.c.l.b16 %v88
    %v179 = vunpack.c.h.b16 %v88
    %v180 = vunpack.c.l.b16 %v89
    %v181 = vunpack.c.h.b16 %v89
    %v182 = vunpack.c.l.b16 %v90
    %v183 = vunpack.c.h.b16 %v90
    %v184 = vunpack.c.l.b16 %v91
    %v185 = vunpack.c.h.b16 %v91
    %v186 = vunpack.c.l.b16 %v92
    %v187 = vunpack.c.h.b16 %v92
    %v188 = vunpack.c.l.b16 %v93
    %v189 = vunpack.c.h.b16 %v93
    %v190 = vunpack.c.l.b16 %v94
    %v191 = vunpack.c.h.b16 %v94
    %v192 = vunpack.c.l.b16 %v95
    %v193 = vunpack.c.h.b16 %v95
    %v194 = vunpack.c.l.b16 %v96
    %v195 = vunpack.c.h.b16 %v96
    %v196 = vunpack.c.l.b16 %v97
    %v197 = vunpack.c.h.b16 %v97
    %v198 = vunpack.c.l.b16 %v98
    %v199 = vunpack.c.h.b16 %v98
    %v200 = vunpack.c.l.b16 %v99
    %v201 = vunpack.c.h.b16 %v99
    %v202 = vunpack.c.l.b16 %v100
    %v203 = vunpack.c.h.b16 %v100
    %v204 = vunpack.c.l.b16 %v101
    %v205 = vunpack.c.h.b16 %v101
    %v206 = vunpack.c.l.b16 %v102
    %v207 = vunpack.c.h.b16 %v102
    %v208 = vunpack.c.l.b16 %v103
    %v209 = vunpack.c.h.b16 %v103
    %v210 = vunpack.c.l.b16 %v104
    %v211 = vunpack.c.h.b16 %v104
    %v212 = vunpack.c.l.b16 %v105
    %v213 = vunpack.c.h.b16 %v105
    %v214 = vunpack.c.l.b16 %v106
    %v215 = vunpack.c.h.b16 %v106
    %v216 = vunpack.c.l.b16 %v107
    %v217 = vunpack.c.h.b16 %v107
    %v218 = vunpack.c.l.b16 %v108
    %v219 = vunpack.c.h.b16 %v108
    %v220 = vunpack.c.l.b16 %v109
    %v221 = vunpack.c.h.b16 %v109
    %v222 = vunpack.c.l.b16 %v110
    %v223 = vunpack.c.h.b16 %v110
    %v224 = vunpack.c.l.b16 %v111
    %v225 = vunpack.c.h.b16 %v111
    %v226 = vunpack.c.l.b16 %v112
    %v227 = vunpack.c.h.b16 %v112
    %v228 = vunpack.c.l.b16 %v113
    %v229 = vunpack.c.h.b16 %v113
    %v230 = vunpack.c.l.b16 %v114
    %v231 = vunpack.c.h.b16 %v114
    %v232 = vunpack.c.l.b16 %v115
    %v233 = vunpack.c.h.b16 %v115
    %v234 = vpack.c.b16 %v174, %v170
    %v235 = vpack.c.b16 %v175, %v171
    %v236 = vpack.c.b16 %v176, %v172
    %v237 = vpack.c.b16 %v177, %v173
    %v238 = vpack.c.b16 %v182, %v178
    %v239 = vpack.c.b16 %v183, %v179
    %v240 = vpack.c.b16 %v184, %v180
    %v241 = vpack.c.b16 %v185, %v181
    %v242 = vpack.c.b16 %v190, %v186
    %v243 = vpack.c.b16 %v191, %v187
    %v244 = vpack.c.b16 %v192, %v188
    %v245 = vpack.c.b16 %v193, %v189
    %v246 = vpack.c.b16 %v198, %v194
    %v247 = vpack.c.b16 %v199, %v195
    %v248 = vpack.c.b16 %v200, %v196
    %v249 = vpack.c.b16 %v201, %v197
    %v250 = vpack.c.b16 %v206, %v202
    %v251 = vpack.c.b16 %v207, %v203
    %v252 = vpack.c.b16 %v208, %v204
    %v253 = vpack.c.b16 %v209, %v205
    %v254 = vpack.c.b16 %v214, %v210
    %v255 = vpack.c.b16 %v215, %v211
    %v256 = vpack.c.b16 %v216, %v212
    %v257 = vpack.c.b16 %v217, %v213
    %v258 = vpack.c.b16 %v222, %v218
    %v259 = vpack.c.b16 %v223, %v219
    %v260 = vpack.c.b16 %v224, %v220
    %v261 = vpack.c.b16 %v225, %v221
    %v262 = vpack.c.b16 %v230, %v226
    %v263 = vpack.c.b16 %v231, %v227
    %v264 = vpack.c.b16 %v232, %v228
    %v265 = vpack.c.b16 %v233, %v229
    %298 = vmatprep.subr.bf16.mxu0 %v263
    %299 = vmatpush1.bf16.msra.mxu0 %v262
    %300 = vmatprep.subr.bf16.mxu0 %v259
    %301 = vmatpush1.bf16.msra.mxu0 %v258
    %302 = vmatprep.subr.bf16.mxu0 %v255
    %303 = vmatpush1.bf16.msra.mxu0 %v254
    %304 = vmatprep.subr.bf16.mxu0 %v251
    %305 = vmatpush1.bf16.msra.mxu0 %v250
    %306 = vmatprep.subr.bf16.mxu0 %v247
    %307 = vmatpush1.bf16.msra.mxu0 %v246
    %308 = vmatprep.subr.bf16.mxu0 %v243
    %309 = vmatpush1.bf16.msra.mxu0 %v242
    %310 = vmatprep.subr.bf16.mxu0 %v239
    %311 = vmatpush1.bf16.msra.mxu0 %v238
    %312 = vmatprep.subr.bf16.mxu0 %v235
    %313 = vmatpush1.bf16.msra.mxu0 %v234
    %314 = vmatprep.subr.bf16.mxu0 0
    %315 = vmatpush2.bf16.msra.mxu0 0
    %316 = vmatprep.subr.bf16.mxu0 0
    %317 = vmatpush2.bf16.msra.mxu0 0
    %318 = vmatprep.subr.bf16.mxu0 0
    %319 = vmatpush2.bf16.msra.mxu0 0
    %320 = vmatprep.subr.bf16.mxu0 0
    %321 = vmatpush2.bf16.msra.mxu0 0
    %322 = vmatprep.subr.bf16.mxu0 0
    %323 = vmatpush2.bf16.msra.mxu0 0
    %324 = vmatprep.subr.bf16.mxu0 0
    %325 = vmatpush2.bf16.msra.mxu0 0
    %326 = vmatprep.subr.bf16.mxu0 0
    %327 = vmatpush2.bf16.msra.mxu0 0
    %328 = vmatprep.subr.bf16.mxu0 0
    %329 = vmatpush2.bf16.msra.mxu0 0
    %330 = vmatprep.mubr.bf16.mxu0 0
    %331 = vmatmul.mubr.bf16.gmra.mxu0 %v83
    %v332 = vpop.f32.mrf.mxu0
    %v333 = vadd.f32 %v121, %v332
    %v334 = vpop.f32.mrf.mxu0
    %v335 = vadd.f32 %v125, %v334
    %v336 = vpop.f32.mrf.mxu0
    %v337 = vadd.f32 %v121, %v336
    %v338 = vpop.f32.mrf.mxu0
    %v339 = vadd.f32 %v125, %v338
    %340 = vdwg.mxu0
    %341 = vmatprep.subr.bf16.mxu0 %v265
    %342 = vmatpush1.bf16.msra.mxu0 %v264
    %343 = vmatprep.subr.bf16.mxu0 %v261
    %344 = vmatpush1.bf16.msra.mxu0 %v260
    %345 = vmatprep.subr.bf16.mxu0 %v257
    %346 = vmatpush1.bf16.msra.mxu0 %v256
    %347 = vmatprep.subr.bf16.mxu0 %v253
    %348 = vmatpush1.bf16.msra.mxu0 %v252
    %349 = vmatprep.subr.bf16.mxu0 %v249
    %350 = vmatpush1.bf16.msra.mxu0 %v248
    %351 = vmatprep.subr.bf16.mxu0 %v245
    %352 = vmatpush1.bf16.msra.mxu0 %v244
    %353 = vmatprep.subr.bf16.mxu0 %v241
    %354 = vmatpush1.bf16.msra.mxu0 %v240
    %355 = vmatprep.subr.bf16.mxu0 %v237
    %356 = vmatpush1.bf16.msra.mxu0 %v236
    %357 = vmatprep.subr.bf16.mxu0 0
    %358 = vmatpush2.bf16.msra.mxu0 0
    %359 = vmatprep.subr.bf16.mxu0 0
    %360 = vmatpush2.bf16.msra.mxu0 0
    %361 = vmatprep.subr.bf16.mxu0 0
    %362 = vmatpush2.bf16.msra.mxu0 0
    %363 = vmatprep.subr.bf16.mxu0 0
    %364 = vmatpush2.bf16.msra.mxu0 0
    %365 = vmatprep.subr.bf16.mxu0 0
    %366 = vmatpush2.bf16.msra.mxu0 0
    %367 = vmatprep.subr.bf16.mxu0 0
    %368 = vmatpush2.bf16.msra.mxu0 0
    %369 = vmatprep.subr.bf16.mxu0 0
    %370 = vmatpush2.bf16.msra.mxu0 0
    %371 = vmatprep.subr.bf16.mxu0 0
    %372 = vmatpush2.bf16.msra.mxu0 0
    %373 = vmatprep.mubr.bf16.mxu0 0
    %374 = vmatmul.mubr.bf16.gmra.mxu0 %v83
    %v375 = vpop.f32.mrf.mxu0
    %v376 = vadd.f32 %v129, %v375
    %v377 = vpop.f32.mrf.mxu0
    %v378 = vadd.f32 %v133, %v377
    %v379 = vpop.f32.mrf.mxu0
    %v380 = vadd.f32 %v129, %v379
    %v381 = vpop.f32.mrf.mxu0
    %v382 = vadd.f32 %v133, %v381
    %383 = vdwg.mxu0
    %v384 = vmul.f32 %v333, 0.5
    %v385 = vmul.f32 %v335, 0.5
    %v386 = vmul.f32 %v337, 0.5
    %v387 = vmul.f32 %v339, 0.5
    %v388 = vmul.f32 %v333, 0.70710677
    %v389 = vmul.f32 %v335, 0.70710677
    %v390 = vmul.f32 %v337, 0.70710677
    %v391 = vmul.f32 %v339, 0.70710677
    %v392 = verf.f32.pop %v388
    %v393 = verf.f32.pop %v389
    %v394 = verf.f32.pop %v390
    %v395 = verf.f32.pop %v391
    %v396 = vadd.f32 %v392, 1.0
    %v397 = vadd.f32 %v393, 1.0
    %v398 = vadd.f32 %v394, 1.0
    %v399 = vadd.f32 %v395, 1.0
    %v400 = vmul.f32 %v384, %v396
    %v401 = vmul.f32 %v385, %v397
    %v402 = vmul.f32 %v386, %v398
    %v403 = vmul.f32 %v387, %v399
    %v404 = vxor.u32 %v376, 2147483648
    %v405 = vxor.u32 %v378, 2147483648
    %v406 = vxor.u32 %v380, 2147483648
    %v407 = vxor.u32 %v382, 2147483648
    %v408 = vmul.f32 %v404, 1.442695
    %v409 = vpow.pop %v408
    %v410 = vmul.f32 %v405, 1.442695
    %v411 = vpow.pop %v410
    %v412 = vmul.f32 %v406, 1.442695
    %v413 = vpow.pop %v412
    %v414 = vmul.f32 %v407, 1.442695
    %v415 = vpow.pop %v414
    %v416 = vadd.f32 %v409, 1.0
    %v417 = vadd.f32 %v411, 1.0
    %v418 = vadd.f32 %v413, 1.0
    %v419 = vadd.f32 %v415, 1.0
    %v420 = vrcp.pop %v416
    %v421 = vmul.f32 1.0, %v420
    %v422 = vrcp.pop %v417
    %v423 = vmul.f32 1.0, %v422
    %v424 = vrcp.pop %v418
    %v425 = vmul.f32 1.0, %v424
    %v426 = vrcp.pop %v419
    %v427 = vmul.f32 1.0, %v426
    %v428 = vmul.f32 %v400, %v421
    %v429 = vmul.f32 %v401, %v423
    %v430 = vmul.f32 %v402, %v425
    %v431 = vmul.f32 %v403, %v427
    %v432 = vpack.c.bf16 %v430, %v428
    %v433 = vpack.c.bf16 %v431, %v429
    %v434 = vld [vmem:[#allocation8] sm:$0xf]
    %v435 = vld [vmem:[#allocation8 + $0x4] sm:$0xf]
    %v436 = vld [vmem:[#allocation8 + $0x8] sm:$0xf]
    %v437 = vld [vmem:[#allocation8 + $0xc] sm:$0xf]
    %v438 = vld [vmem:[#allocation8 + $0x10] sm:$0xf]
    %v439 = vld [vmem:[#allocation8 + $0x14] sm:$0xf]
    %v440 = vld [vmem:[#allocation8 + $0x18] sm:$0xf]
    %v441 = vld [vmem:[#allocation8 + $0x1c] sm:$0xf]
    %v442 = vld [vmem:[#allocation8 + $0x20] sm:$0xf]
    %v443 = vld [vmem:[#allocation8 + $0x24] sm:$0xf]
    %v444 = vld [vmem:[#allocation8 + $0x28] sm:$0xf]
    %v445 = vld [vmem:[#allocation8 + $0x2c] sm:$0xf]
    %v446 = vld [vmem:[#allocation8 + $0x30] sm:$0xf]
    %v447 = vld [vmem:[#allocation8 + $0x34] sm:$0xf]
    %v448 = vld [vmem:[#allocation8 + $0x38] sm:$0xf]
    %v449 = vld [vmem:[#allocation8 + $0x3c] sm:$0xf]
    %v450 = vld [vmem:[#allocation8 + $0x40] sm:$0xf]
    %v451 = vld [vmem:[#allocation8 + $0x44] sm:$0xf]
    %v452 = vld [vmem:[#allocation8 + $0x48] sm:$0xf]
    %v453 = vld [vmem:[#allocation8 + $0x4c] sm:$0xf]
    %v454 = vld [vmem:[#allocation8 + $0x50] sm:$0xf]
    %v455 = vld [vmem:[#allocation8 + $0x54] sm:$0xf]
    %v456 = vld [vmem:[#allocation8 + $0x58] sm:$0xf]
    %v457 = vld [vmem:[#allocation8 + $0x5c] sm:$0xf]
    %v458 = vld [vmem:[#allocation8 + $0x60] sm:$0xf]
    %v459 = vld [vmem:[#allocation8 + $0x64] sm:$0xf]
    %v460 = vld [vmem:[#allocation8 + $0x68] sm:$0xf]
    %v461 = vld [vmem:[#allocation8 + $0x6c] sm:$0xf]
    %v462 = vld [vmem:[#allocation8 + $0x70] sm:$0xf]
    %v463 = vld [vmem:[#allocation8 + $0x74] sm:$0xf]
    %v464 = vld [vmem:[#allocation8 + $0x78] sm:$0xf]
    %v465 = vld [vmem:[#allocation8 + $0x7c] sm:$0xf]
    %v498 = vunpack.c.l.b16 %v434
    %v499 = vunpack.c.l.b16 %v435
    %v500 = vunpack.c.l.b16 %v436
    %v501 = vunpack.c.l.b16 %v437
    %v502 = vunpack.c.l.b16 %v438
    %v503 = vunpack.c.l.b16 %v439
    %v504 = vunpack.c.l.b16 %v440
    %v505 = vunpack.c.l.b16 %v441
    %v506 = vunpack.c.l.b16 %v442
    %v507 = vunpack.c.l.b16 %v443
    %v508 = vunpack.c.l.b16 %v444
    %v509 = vunpack.c.l.b16 %v445
    %v510 = vunpack.c.l.b16 %v446
    %v511 = vunpack.c.l.b16 %v447
    %v512 = vunpack.c.l.b16 %v448
    %v513 = vunpack.c.l.b16 %v449
    %v514 = vunpack.c.l.b16 %v450
    %v515 = vunpack.c.l.b16 %v451
    %v516 = vunpack.c.l.b16 %v452
    %v517 = vunpack.c.l.b16 %v453
    %v518 = vunpack.c.l.b16 %v454
    %v519 = vunpack.c.l.b16 %v455
    %v520 = vunpack.c.l.b16 %v456
    %v521 = vunpack.c.l.b16 %v457
    %v522 = vunpack.c.l.b16 %v458
    %v523 = vunpack.c.l.b16 %v459
    %v524 = vunpack.c.l.b16 %v460
    %v525 = vunpack.c.l.b16 %v461
    %v526 = vunpack.c.l.b16 %v462
    %v527 = vunpack.c.l.b16 %v463
    %v528 = vunpack.c.l.b16 %v464
    %v529 = vunpack.c.l.b16 %v465
    %v530 = vpack.c.b16 %v499, %v498
    %v531 = vpack.c.b16 %v501, %v500
    %v532 = vpack.c.b16 %v503, %v502
    %v533 = vpack.c.b16 %v505, %v504
    %v534 = vpack.c.b16 %v507, %v506
    %v535 = vpack.c.b16 %v509, %v508
    %v536 = vpack.c.b16 %v511, %v510
    %v537 = vpack.c.b16 %v513, %v512
    %v538 = vpack.c.b16 %v515, %v514
    %v539 = vpack.c.b16 %v517, %v516
    %v540 = vpack.c.b16 %v519, %v518
    %v541 = vpack.c.b16 %v521, %v520
    %v542 = vpack.c.b16 %v523, %v522
    %v543 = vpack.c.b16 %v525, %v524
    %v544 = vpack.c.b16 %v527, %v526
    %v545 = vpack.c.b16 %v529, %v528
    %562 = vmatprep.subr.bf16.mxu0 0
    %563 = vmatpush1.bf16.msra.mxu0 %v537
    %564 = vmatprep.subr.bf16.mxu0 0
    %565 = vmatpush1.bf16.msra.mxu0 %v536
    %566 = vmatprep.subr.bf16.mxu0 0
    %567 = vmatpush1.bf16.msra.mxu0 %v535
    %568 = vmatprep.subr.bf16.mxu0 0
    %569 = vmatpush1.bf16.msra.mxu0 %v534
    %570 = vmatprep.subr.bf16.mxu0 0
    %571 = vmatpush1.bf16.msra.mxu0 %v533
    %572 = vmatprep.subr.bf16.mxu0 0
    %573 = vmatpush1.bf16.msra.mxu0 %v532
    %574 = vmatprep.subr.bf16.mxu0 0
    %575 = vmatpush1.bf16.msra.mxu0 %v531
    %576 = vmatprep.subr.bf16.mxu0 0
    %577 = vmatpush1.bf16.msra.mxu0 %v530
    %578 = vmatprep.subr.bf16.mxu0 0
    %579 = vmatpush2.bf16.msra.mxu0 %v545
    %580 = vmatprep.subr.bf16.mxu0 0
    %581 = vmatpush2.bf16.msra.mxu0 %v544
    %582 = vmatprep.subr.bf16.mxu0 0
    %583 = vmatpush2.bf16.msra.mxu0 %v543
    %584 = vmatprep.subr.bf16.mxu0 0
    %585 = vmatpush2.bf16.msra.mxu0 %v542
    %586 = vmatprep.subr.bf16.mxu0 0
    %587 = vmatpush2.bf16.msra.mxu0 %v541
    %588 = vmatprep.subr.bf16.mxu0 0
    %589 = vmatpush2.bf16.msra.mxu0 %v540
    %590 = vmatprep.subr.bf16.mxu0 0
    %591 = vmatpush2.bf16.msra.mxu0 %v539
    %592 = vmatprep.subr.bf16.mxu0 0
    %593 = vmatpush2.bf16.msra.mxu0 %v538
    %594 = vmatprep.mubr.bf16.mxu0 %v433
    %595 = vmatmul.mubr.bf16.gmra.mxu0 %v432
    %v596 = vpop.f32.mrf.mxu0
    %v597 = vadd.f32 0.0, %v596
    %v598 = vpop.f32.mrf.mxu0
    %v599 = vpop.f32.mrf.mxu0
    %v600 = vadd.f32 0.0, %v599
    %v601 = vpop.f32.mrf.mxu0
    %602 = vdwg.mxu0
    %v603 = vadd.f32 %v81, %v597
    %v604 = vadd.f32 %v82, %v600
    %v605 = vld [vmem:[%s4] sm:$0x1]
    %v607 = vlaneseq
    %v608 = vshrl.u32 %v607, 7
    %v609 = vsub.s32 0, %v608
    %v610 = vrot.slane %v605, %v609
    %v612 = vadd.f32 %v603, %v610
    %v613 = vadd.f32 %v604, %v610
    %v614 = vld [vmem:[%s5] sm:$0x1]
    %v615 = vld [vmem:[%s6] sm:$0x1]
    %616 = vadd.xlane.f32.xlu0 %v612
    %v617 = vpop.xlane.xlu0 %616
    %618 = vadd.xlane.f32.xlu0 %v613
    %v619 = vpop.xlane.xlu0 %618
    %v620 = vrcp.pop 128.0
    %v621 = vmul.f32 %v617, %v620
    %v622 = vmul.f32 %v619, %v620
    %v623 = vsub.f32 %v612, %v621
    %v624 = vsub.f32 %v613, %v622
    %v625 = vmul.f32 %v623, %v623
    %v626 = vmul.f32 %v624, %v624
    %627 = vadd.xlane.f32.xlu0 %v625
    %v628 = vpop.xlane.xlu0 %627
    %629 = vadd.xlane.f32.xlu0 %v626
    %v630 = vpop.xlane.xlu0 %629
    %v631 = vmul.f32 %v628, %v620
    %v632 = vmul.f32 %v630, %v620
    %v633 = vadd.f32 %v631, 1e-12
    %v634 = vadd.f32 %v632, 1e-12
    %v635 = vrsqrt.pop %v633
    %v636 = vrsqrt.pop %v634
    %v637 = vmul.f32 %v623, %v635
    %v638 = vmul.f32 %v624, %v636
    %v640 = vlaneseq
    %v641 = vshrl.u32 %v640, 7
    %v642 = vsub.s32 0, %v641
    %v643 = vrot.slane %v614, %v642
    %v645 = vmul.f32 %v637, %v643
    %v646 = vmul.f32 %v638, %v643
    %v648 = vlaneseq
    %v649 = vshrl.u32 %v648, 7
    %v650 = vsub.s32 0, %v649
    %v651 = vrot.slane %v615, %v650
    %v653 = vadd.f32 %v645, %v651
    %v654 = vadd.f32 %v646, %v651
    %655 = vst [vmem:[#allocation10] sm:$0xff] %v653
    %656 = vst [vmem:[#allocation10 + $0x8] sm:$0xff] %v654
    // Predicated region
    $region46: #{tpu_custom_call.1} parent=1 // pred_check
      _
    $region47: #{tpu_custom_call.1} parent=1 // pred_check_branch
      %658 = sbr.rel (0) target = $region49
    $region48: #{tpu_custom_call.1} parent=1 // pred_region
      %s660 = ssub.s32 256, 256
      %661 = vsyncadd [#allocation4], %s660
      %s662 = sshll.u32 [#allocation10], 4
      %s663 = int_to_ptr.vmem [resolvable:$true] %s662
      %668 = dma.vmem_to_hbm [thread:$0]  %s663, 256, %s7, [#allocation4], 128, 128, 8
    $region49: #{tpu_custom_call.1} parent=1 // pred_fallthru
      _
    // Predicated region
    $region50: #{tpu_custom_call.1} parent=1 // pred_check
      _
    $region51: #{tpu_custom_call.1} parent=1 // pred_check_branch
      %670 = sbr.rel (0) target = $region53
    $region52: #{tpu_custom_call.1} parent=1 // pred_region
      %671 = dma.done [#allocation4], 256
    $region53: #{tpu_custom_call.1} parent=1 // pred_fallthru
      _
    %672 = vsyncpa [#allocation3], 1
    %673 = vsyncpa [#allocation6], 1
    %674 = vsyncpa [#allocation9], 1
    %675 = vsyncpa [#allocation4], 1

// kernel: tpu_custom_call.1
$region0: #{tpu_custom_call.1}
  #allocation0 [shape = 'u32[]', space=smem, size = 0x4, offset = 0x4, fixed_abs, tag = 'smem constant byte address 0x4 - core index']
  #allocation1 [shape = 'u32[144,128]{1,0:T(1,128)}', space=vmem, size = 0x12000, scoped, tag = 'internal scratch']
  %s0 = inlined_call_operand.hbm [shape: f32[16,128], index: 0, kind: input, shape index: {}]
  %s1 = inlined_call_operand.hbm [shape: bf16[128,512], index: 1, kind: input, shape index: {}]
  %s2 = inlined_call_operand.hbm [shape: f32[1,512], index: 2, kind: input, shape index: {}]
  %s3 = inlined_call_operand.hbm [shape: bf16[256,128], index: 3, kind: input, shape index: {}]
  %s4 = inlined_call_operand.vmem [shape: f32[1,128], index: 4, kind: input, shape index: {}]
  %s5 = inlined_call_operand.vmem [shape: f32[1,128], index: 5, kind: input, shape index: {}]
  %s6 = inlined_call_operand.vmem [shape: f32[1,128], index: 6, kind: input, shape index: {}]
  %s7 = inlined_call_operand.hbm [shape: f32[16,128], index: 7, kind: output, shape index: {}]
  %s8 = sld [smem:[#allocation0]]
  $region54: #{tpu_custom_call.1} parent=0
    _
  %s10 = ssub.s32 1, %s8
  %s11 = scalar_select 0, %s10, %s8
  $region1: #{tpu_custom_call.1} parent=0
    #allocation2 [shape = 'u8[8192]{0}', space=vmem, size = 0x2000, scoped, tag = 'input window, operand 0, single buffered']
    #allocation3 [shape = 's32[1]{0}', space=sflag, size = 0x4, scoped, tag = 'scoped memory for tpu_custom_call.1']
    #allocation4 [shape = 's32[1]{0}', space=sflag, size = 0x4, scoped, tag = 'scoped memory for tpu_custom_call.1']
    #allocation5 [shape = 'u8[131072]{0}', space=vmem, size = 0x20000, scoped, tag = 'input window, operand 1, single buffered']
    #allocation6 [shape = 's32[1]{0}', space=sflag, size = 0x4, scoped, tag = 'scoped memory for tpu_custom_call.1']
    #allocation7 [shape = 'u8[2048]{0}', space=vmem, size = 0x800, scoped, tag = 'input window, operand 2, single buffered']
    #allocation8 [shape = 'u8[65536]{0}', space=vmem, size = 0x10000, scoped, tag = 'input window, operand 3, single buffered']
    #allocation9 [shape = 's32[1]{0}', space=sflag, size = 0x4, scoped, tag = 'scoped memory for tpu_custom_call.1']
    #allocation10 [shape = 'u8[8192]{0}', space=vmem, size = 0x2000, scoped, tag = 'output window, operand 0, single buffered']
    %12 = vsyncpa [#allocation3], 0
    %13 = vsyncpa [#allocation6], 0
    %14 = vsyncpa [#allocation9], 0
    %15 = vsyncpa [#allocation4], 0
    // Predicated region
    $region2: #{tpu_custom_call.1} parent=1 // pred_check
      _
    $region3: #{tpu_custom_call.1} parent=1 // pred_check_branch
      %17 = sbr.rel (0) target = $region5
    $region4: #{tpu_custom_call.1} parent=1 // pred_region
      %s19 = ssub.s32 256, 256
      %20 = vsyncadd [#allocation3], %s19
      %s21 = sshll.u32 [#allocation2], 4
      %s22 = int_to_ptr.vmem [resolvable:$true] %s21
      %27 = dma.hbm_to_vmem [thread:$0]  %s0, 256, %s22, [#allocation3], 128, 128, 8
    $region5: #{tpu_custom_call.1} parent=1 // pred_fallthru
      _
    // Predicated region
    $region6: #{tpu_custom_call.1} parent=1 // pred_check
      _
    $region7: #{tpu_custom_call.1} parent=1 // pred_check_branch
      %29 = sbr.rel (0) target = $region9
    $region8: #{tpu_custom_call.1} parent=1 // pred_region
      %s31 = ssub.s32 4096, 4096
      %32 = vsyncadd [#allocation6], %s31
      %s33 = sshll.u32 [#allocation5], 4
      %s34 = int_to_ptr.vmem [resolvable:$true] %s33
      %39 = dma.hbm_to_vmem [thread:$0]  %s1, 4096, %s34, [#allocation6], 256, 256, 16
    $region9: #{tpu_custom_call.1} parent=1 // pred_fallthru
      _
    // Predicated region
    $region10: #{tpu_custom_call.1} parent=1 // pred_check
      _
    $region11: #{tpu_custom_call.1} parent=1 // pred_check_branch
      %41 = sbr.rel (0) target = $region13
    $region12: #{tpu_custom_call.1} parent=1 // pred_region
      %s43 = ssub.s32 64, 64
      %44 = vsyncadd [#allocation6], %s43
      %s46 = sshll.u32 [#allocation7], 4
      %s47 = int_to_ptr.vmem [resolvable:$true] %s46
      %49 = dma.hbm_to_vmem [thread:$0]  %s2, 64, %s47, [#allocation6]
    $region13: #{tpu_custom_call.1} parent=1 // pred_fallthru
      _
    // Predicated region
    $region14: #{tpu_custom_call.1} parent=1 // pred_check
      _
    $region15: #{tpu_custom_call.1} parent=1 // pred_check_branch
      %51 = sbr.rel (0) target = $region17
    $region16: #{tpu_custom_call.1} parent=1 // pred_region
      %s53 = ssub.s32 2048, 2048
      %54 = vsyncadd [#allocation9], %s53
      %s55 = sshll.u32 [#allocation8], 4
      %s56 = int_to_ptr.vmem [resolvable:$true] %s55
      %61 = dma.hbm_to_vmem [thread:$0]  %s3, 2048, %s56, [#allocation9], 64, 64, 4
    $region17: #{tpu_custom_call.1} parent=1 // pred_fallthru
      _
    // Predicated region
    $region18: #{tpu_custom_call.1} parent=1 // pred_check
      _
    $region19: #{tpu_custom_call.1} parent=1 // pred_check_branch
      %63 = sbr.rel (0) target = $region21
    $region20: #{tpu_custom_call.1} parent=1 // pred_region
      _
    $region21: #{tpu_custom_call.1} parent=1 // pred_fallthru
      _
    // Predicated region
    $region22: #{tpu_custom_call.1} parent=1 // pred_check
      _
    $region23: #{tpu_custom_call.1} parent=1 // pred_check_branch
      %65 = sbr.rel (0) target = $region25
    $region24: #{tpu_custom_call.1} parent=1 // pred_region
      _
    $region25: #{tpu_custom_call.1} parent=1 // pred_fallthru
      _
    // Predicated region
    $region26: #{tpu_custom_call.1} parent=1 // pred_check
      _
    $region27: #{tpu_custom_call.1} parent=1 // pred_check_branch
      %67 = sbr.rel (0) target = $region29
    $region28: #{tpu_custom_call.1} parent=1 // pred_region
      _
    $region29: #{tpu_custom_call.1} parent=1 // pred_fallthru
      _
    // Predicated region
    $region30: #{tpu_custom_call.1} parent=1 // pred_check
      _
    $region31: #{tpu_custom_call.1} parent=1 // pred_check_branch
      %69 = sbr.rel (0) target = $region33
    $region32: #{tpu_custom_call.1} parent=1 // pred_region
      %70 = dma.done [#allocation3], 256
    $region33: #{tpu_custom_call.1} parent=1 // pred_fallthru
      _
    // Predicated region
    $region34: #{tpu_custom_call.1} parent=1 // pred_check
      _
    $region35: #{tpu_custom_call.1} parent=1 // pred_check_branch
      %72 = sbr.rel (0) target = $region37
    $region36: #{tpu_custom_call.1} parent=1 // pred_region
      %73 = dma.done [#allocation6], 4096
    $region37: #{tpu_custom_call.1} parent=1 // pred_fallthru
      _
    // Predicated region
    $region38: #{tpu_custom_call.1} parent=1 // pred_check
      _
    $region39: #{tpu_custom_call.1} parent=1 // pred_check_branch
      %75 = sbr.rel (0) target = $region41
    $region40: #{tpu_custom_call.1} parent=1 // pred_region
      %76 = dma.done [#allocation6], 64
    $region41: #{tpu_custom_call.1} parent=1 // pred_fallthru
      _
    // Predicated region
    $region42: #{tpu_custom_call.1} parent=1 // pred_check
      _
    $region43: #{tpu_custom_call.1} parent=1 // pred_check_branch
      %78 = sbr.rel (0) target = $region45
    $region44: #{tpu_custom_call.1} parent=1 // pred_region
      %79 = dma.done [#allocation9], 2048
    $region45: #{tpu_custom_call.1} parent=1 // pred_fallthru
      _
    %v81 = vld [vmem:[#allocation2] sm:$0xff]
    %v82 = vld [vmem:[#allocation2 + $0x8] sm:$0xff]
    %v83 = vpack.c.bf16 %v82, %v81
    %v84 = vld [vmem:[#allocation5] sm:$0xff]
    %v85 = vld [vmem:[#allocation5 + $0x8] sm:$0xff]
    %v86 = vld [vmem:[#allocation5 + $0x10] sm:$0xff]
    %v87 = vld [vmem:[#allocation5 + $0x18] sm:$0xff]
    %v88 = vld [vmem:[#allocation5 + $0x20] sm:$0xff]
    %v89 = vld [vmem:[#allocation5 + $0x28] sm:$0xff]
    %v90 = vld [vmem:[#allocation5 + $0x30] sm:$0xff]
    %v91 = vld [vmem:[#allocation5 + $0x38] sm:$0xff]
    %v92 = vld [vmem:[#allocation5 + $0x40] sm:$0xff]
    %v93 = vld [vmem:[#allocation5 + $0x48] sm:$0xff]
    %v94 = vld [vmem:[#allocation5 + $0x50] sm:$0xff]
    %v95 = vld [vmem:[#allocation5 + $0x58] sm:$0xff]
    %v96 = vld [vmem:[#allocation5 + $0x60] sm:$0xff]
    %v97 = vld [vmem:[#allocation5 + $0x68] sm:$0xff]
    %v98 = vld [vmem:[#allocation5 + $0x70] sm:$0xff]
    %v99 = vld [vmem:[#allocation5 + $0x78] sm:$0xff]
    %v100 = vld [vmem:[#allocation5 + $0x80] sm:$0xff]
    %v101 = vld [vmem:[#allocation5 + $0x88] sm:$0xff]
    %v102 = vld [vmem:[#allocation5 + $0x90] sm:$0xff]
    %v103 = vld [vmem:[#allocation5 + $0x98] sm:$0xff]
    %v104 = vld [vmem:[#allocation5 + $0xa0] sm:$0xff]
    %v105 = vld [vmem:[#allocation5 + $0xa8] sm:$0xff]
    %v106 = vld [vmem:[#allocation5 + $0xb0] sm:$0xff]
    %v107 = vld [vmem:[#allocation5 + $0xb8] sm:$0xff]
    %v108 = vld [vmem:[#allocation5 + $0xc0] sm:$0xff]
    %v109 = vld [vmem:[#allocation5 + $0xc8] sm:$0xff]
    %v110 = vld [vmem:[#allocation5 + $0xd0] sm:$0xff]
    %v111 = vld [vmem:[#allocation5 + $0xd8] sm:$0xff]
    %v112 = vld [vmem:[#allocation5 + $0xe0] sm:$0xff]
    %v113 = vld [vmem:[#allocation5 + $0xe8] sm:$0xff]
    %v114 = vld [vmem:[#allocation5 + $0xf0] sm:$0xff]
    %v115 = vld [vmem:[#allocation5 + $0xf8] sm:$0xff]
    %v116 = vld [vmem:[#allocation7] sm:$0xf]
    %v118 = vlaneseq
    %v119 = vshrl.u32 %v118, 7
    %v120 = vsub.s32 0, %v119
    %v121 = vrot.slane %v116, %v120
    %v122 = vlaneseq
    %v123 = vshrl.u32 %v122, 7
    %v124 = vsub.s32 1, %v123
    %v125 = vrot.slane %v116, %v124
    %v126 = vlaneseq
    %v127 = vshrl.u32 %v126, 7
    %v128 = vsub.s32 2, %v127
    %v129 = vrot.slane %v116, %v128
    %v130 = vlaneseq
    %v131 = vshrl.u32 %v130, 7
    %v132 = vsub.s32 3, %v131
    %v133 = vrot.slane %v116, %v132
    %v170 = vunpack.c.l.b16 %v84
    %v171 = vunpack.c.h.b16 %v84
    %v172 = vunpack.c.l.b16 %v85
    %v173 = vunpack.c.h.b16 %v85
    %v174 = vunpack.c.l.b16 %v86
    %v175 = vunpack.c.h.b16 %v86
    %v176 = vunpack.c.l.b16 %v87
    %v177 = vunpack.c.h.b16 %v87
    %v178 = vunpack.c.l.b16 %v88
    %v179 = vunpack.c.h.b16 %v88
    %v180 = vunpack.c.l.b16 %v89
    %v181 = vunpack.c.h.b16 %v89
    %v182 = vunpack.c.l.b16 %v90
    %v183 = vunpack.c.h.b16 %v90
    %v184 = vunpack.c.l.b16 %v91
    %v185 = vunpack.c.h.b16 %v91
    %v186 = vunpack.c.l.b16 %v92
    %v187 = vunpack.c.h.b16 %v92
    %v188 = vunpack.c.l.b16 %v93
    %v189 = vunpack.c.h.b16 %v93
    %v190 = vunpack.c.l.b16 %v94
    %v191 = vunpack.c.h.b16 %v94
    %v192 = vunpack.c.l.b16 %v95
    %v193 = vunpack.c.h.b16 %v95
    %v194 = vunpack.c.l.b16 %v96
    %v195 = vunpack.c.h.b16 %v96
    %v196 = vunpack.c.l.b16 %v97
    %v197 = vunpack.c.h.b16 %v97
    %v198 = vunpack.c.l.b16 %v98
    %v199 = vunpack.c.h.b16 %v98
    %v200 = vunpack.c.l.b16 %v99
    %v201 = vunpack.c.h.b16 %v99
    %v202 = vunpack.c.l.b16 %v100
    %v203 = vunpack.c.h.b16 %v100
    %v204 = vunpack.c.l.b16 %v101
    %v205 = vunpack.c.h.b16 %v101
    %v206 = vunpack.c.l.b16 %v102
    %v207 = vunpack.c.h.b16 %v102
    %v208 = vunpack.c.l.b16 %v103
    %v209 = vunpack.c.h.b16 %v103
    %v210 = vunpack.c.l.b16 %v104
    %v211 = vunpack.c.h.b16 %v104
    %v212 = vunpack.c.l.b16 %v105
    %v213 = vunpack.c.h.b16 %v105
    %v214 = vunpack.c.l.b16 %v106
    %v215 = vunpack.c.h.b16 %v106
    %v216 = vunpack.c.l.b16 %v107
    %v217 = vunpack.c.h.b16 %v107
    %v218 = vunpack.c.l.b16 %v108
    %v219 = vunpack.c.h.b16 %v108
    %v220 = vunpack.c.l.b16 %v109
    %v221 = vunpack.c.h.b16 %v109
    %v222 = vunpack.c.l.b16 %v110
    %v223 = vunpack.c.h.b16 %v110
    %v224 = vunpack.c.l.b16 %v111
    %v225 = vunpack.c.h.b16 %v111
    %v226 = vunpack.c.l.b16 %v112
    %v227 = vunpack.c.h.b16 %v112
    %v228 = vunpack.c.l.b16 %v113
    %v229 = vunpack.c.h.b16 %v113
    %v230 = vunpack.c.l.b16 %v114
    %v231 = vunpack.c.h.b16 %v114
    %v232 = vunpack.c.l.b16 %v115
    %v233 = vunpack.c.h.b16 %v115
    %v234 = vpack.c.b16 %v174, %v170
    %v235 = vpack.c.b16 %v175, %v171
    %v236 = vpack.c.b16 %v176, %v172
    %v237 = vpack.c.b16 %v177, %v173
    %v238 = vpack.c.b16 %v182, %v178
    %v239 = vpack.c.b16 %v183, %v179
    %v240 = vpack.c.b16 %v184, %v180
    %v241 = vpack.c.b16 %v185, %v181
    %v242 = vpack.c.b16 %v190, %v186
    %v243 = vpack.c.b16 %v191, %v187
    %v244 = vpack.c.b16 %v192, %v188
    %v245 = vpack.c.b16 %v193, %v189
    %v246 = vpack.c.b16 %v198, %v194
    %v247 = vpack.c.b16 %v199, %v195
    %v248 = vpack.c.b16 %v200, %v196
    %v249 = vpack.c.b16 %v201, %v197
    %v250 = vpack.c.b16 %v206, %v202
    %v251 = vpack.c.b16 %v207, %v203
    %v252 = vpack.c.b16 %v208, %v204
    %v253 = vpack.c.b16 %v209, %v205
    %v254 = vpack.c.b16 %v214, %v210
    %v255 = vpack.c.b16 %v215, %v211
    %v256 = vpack.c.b16 %v216, %v212
    %v257 = vpack.c.b16 %v217, %v213
    %v258 = vpack.c.b16 %v222, %v218
    %v259 = vpack.c.b16 %v223, %v219
    %v260 = vpack.c.b16 %v224, %v220
    %v261 = vpack.c.b16 %v225, %v221
    %v262 = vpack.c.b16 %v230, %v226
    %v263 = vpack.c.b16 %v231, %v227
    %v264 = vpack.c.b16 %v232, %v228
    %v265 = vpack.c.b16 %v233, %v229
    %298 = vmatprep.subr.bf16.mxu0 %v263
    %299 = vmatpush1.bf16.msra.mxu0 %v262
    %300 = vmatprep.subr.bf16.mxu0 %v259
    %301 = vmatpush1.bf16.msra.mxu0 %v258
    %302 = vmatprep.subr.bf16.mxu0 %v255
    %303 = vmatpush1.bf16.msra.mxu0 %v254
    %304 = vmatprep.subr.bf16.mxu0 %v251
    %305 = vmatpush1.bf16.msra.mxu0 %v250
    %306 = vmatprep.subr.bf16.mxu0 %v247
    %307 = vmatpush1.bf16.msra.mxu0 %v246
    %308 = vmatprep.subr.bf16.mxu0 %v243
    %309 = vmatpush1.bf16.msra.mxu0 %v242
    %310 = vmatprep.subr.bf16.mxu0 %v239
    %311 = vmatpush1.bf16.msra.mxu0 %v238
    %312 = vmatprep.subr.bf16.mxu0 %v235
    %313 = vmatpush1.bf16.msra.mxu0 %v234
    %314 = vmatprep.subr.bf16.mxu0 0
    %315 = vmatpush2.bf16.msra.mxu0 0
    %316 = vmatprep.subr.bf16.mxu0 0
    %317 = vmatpush2.bf16.msra.mxu0 0
    %318 = vmatprep.subr.bf16.mxu0 0
    %319 = vmatpush2.bf16.msra.mxu0 0
    %320 = vmatprep.subr.bf16.mxu0 0
    %321 = vmatpush2.bf16.msra.mxu0 0
    %322 = vmatprep.subr.bf16.mxu0 0
    %323 = vmatpush2.bf16.msra.mxu0 0
    %324 = vmatprep.subr.bf16.mxu0 0
    %325 = vmatpush2.bf16.msra.mxu0 0
    %326 = vmatprep.subr.bf16.mxu0 0
    %327 = vmatpush2.bf16.msra.mxu0 0
    %328 = vmatprep.subr.bf16.mxu0 0
    %329 = vmatpush2.bf16.msra.mxu0 0
    %330 = vmatprep.mubr.bf16.mxu0 0
    %331 = vmatmul.mubr.bf16.gmra.mxu0 %v83
    %v332 = vpop.f32.mrf.mxu0
    %v333 = vadd.f32 %v121, %v332
    %v334 = vpop.f32.mrf.mxu0
    %v335 = vadd.f32 %v125, %v334
    %v336 = vpop.f32.mrf.mxu0
    %v337 = vadd.f32 %v121, %v336
    %v338 = vpop.f32.mrf.mxu0
    %v339 = vadd.f32 %v125, %v338
    %340 = vdwg.mxu0
    %341 = vmatprep.subr.bf16.mxu0 %v265
    %342 = vmatpush1.bf16.msra.mxu0 %v264
    %343 = vmatprep.subr.bf16.mxu0 %v261
    %344 = vmatpush1.bf16.msra.mxu0 %v260
    %345 = vmatprep.subr.bf16.mxu0 %v257
    %346 = vmatpush1.bf16.msra.mxu0 %v256
    %347 = vmatprep.subr.bf16.mxu0 %v253
    %348 = vmatpush1.bf16.msra.mxu0 %v252
    %349 = vmatprep.subr.bf16.mxu0 %v249
    %350 = vmatpush1.bf16.msra.mxu0 %v248
    %351 = vmatprep.subr.bf16.mxu0 %v245
    %352 = vmatpush1.bf16.msra.mxu0 %v244
    %353 = vmatprep.subr.bf16.mxu0 %v241
    %354 = vmatpush1.bf16.msra.mxu0 %v240
    %355 = vmatprep.subr.bf16.mxu0 %v237
    %356 = vmatpush1.bf16.msra.mxu0 %v236
    %357 = vmatprep.subr.bf16.mxu0 0
    %358 = vmatpush2.bf16.msra.mxu0 0
    %359 = vmatprep.subr.bf16.mxu0 0
    %360 = vmatpush2.bf16.msra.mxu0 0
    %361 = vmatprep.subr.bf16.mxu0 0
    %362 = vmatpush2.bf16.msra.mxu0 0
    %363 = vmatprep.subr.bf16.mxu0 0
    %364 = vmatpush2.bf16.msra.mxu0 0
    %365 = vmatprep.subr.bf16.mxu0 0
    %366 = vmatpush2.bf16.msra.mxu0 0
    %367 = vmatprep.subr.bf16.mxu0 0
    %368 = vmatpush2.bf16.msra.mxu0 0
    %369 = vmatprep.subr.bf16.mxu0 0
    %370 = vmatpush2.bf16.msra.mxu0 0
    %371 = vmatprep.subr.bf16.mxu0 0
    %372 = vmatpush2.bf16.msra.mxu0 0
    %373 = vmatprep.mubr.bf16.mxu0 0
    %374 = vmatmul.mubr.bf16.gmra.mxu0 %v83
    %v375 = vpop.f32.mrf.mxu0
    %v376 = vadd.f32 %v129, %v375
    %v377 = vpop.f32.mrf.mxu0
    %v378 = vadd.f32 %v133, %v377
    %v379 = vpop.f32.mrf.mxu0
    %v380 = vadd.f32 %v129, %v379
    %v381 = vpop.f32.mrf.mxu0
    %v382 = vadd.f32 %v133, %v381
    %383 = vdwg.mxu0
    %v384 = vmul.f32 %v333, 0.5
    %v385 = vmul.f32 %v335, 0.5
    %v386 = vmul.f32 %v337, 0.5
    %v387 = vmul.f32 %v339, 0.5
    %v388 = vmul.f32 %v333, 0.70710677
    %v389 = vmul.f32 %v335, 0.70710677
    %v390 = vmul.f32 %v337, 0.70710677
    %v391 = vmul.f32 %v339, 0.70710677
    %v392 = verf.f32.pop %v388
    %v393 = verf.f32.pop %v389
    %v394 = verf.f32.pop %v390
    %v395 = verf.f32.pop %v391
    %v396 = vadd.f32 %v392, 1.0
    %v397 = vadd.f32 %v393, 1.0
    %v398 = vadd.f32 %v394, 1.0
    %v399 = vadd.f32 %v395, 1.0
    %v400 = vmul.f32 %v384, %v396
    %v401 = vmul.f32 %v385, %v397
    %v402 = vmul.f32 %v386, %v398
    %v403 = vmul.f32 %v387, %v399
    %v404 = vxor.u32 %v376, 2147483648
    %v405 = vxor.u32 %v378, 2147483648
    %v406 = vxor.u32 %v380, 2147483648
    %v407 = vxor.u32 %v382, 2147483648
    %v408 = vmul.f32 %v404, 1.442695
    %v409 = vpow.pop %v408
    %v410 = vmul.f32 %v405, 1.442695
    %v411 = vpow.pop %v410
    %v412 = vmul.f32 %v406, 1.442695
    %v413 = vpow.pop %v412
    %v414 = vmul.f32 %v407, 1.442695
    %v415 = vpow.pop %v414
    %v416 = vadd.f32 %v409, 1.0
    %v417 = vadd.f32 %v411, 1.0
    %v418 = vadd.f32 %v413, 1.0
    %v419 = vadd.f32 %v415, 1.0
    %v420 = vrcp.pop %v416
    %v421 = vmul.f32 1.0, %v420
    %v422 = vrcp.pop %v417
    %v423 = vmul.f32 1.0, %v422
    %v424 = vrcp.pop %v418
    %v425 = vmul.f32 1.0, %v424
    %v426 = vrcp.pop %v419
    %v427 = vmul.f32 1.0, %v426
    %v428 = vmul.f32 %v400, %v421
    %v429 = vmul.f32 %v401, %v423
    %v430 = vmul.f32 %v402, %v425
    %v431 = vmul.f32 %v403, %v427
    %v432 = vpack.c.bf16 %v430, %v428
    %v433 = vpack.c.bf16 %v431, %v429
    %v434 = vld [vmem:[#allocation8] sm:$0xf]
    %v435 = vld [vmem:[#allocation8 + $0x4] sm:$0xf]
    %v436 = vld [vmem:[#allocation8 + $0x8] sm:$0xf]
    %v437 = vld [vmem:[#allocation8 + $0xc] sm:$0xf]
    %v438 = vld [vmem:[#allocation8 + $0x10] sm:$0xf]
    %v439 = vld [vmem:[#allocation8 + $0x14] sm:$0xf]
    %v440 = vld [vmem:[#allocation8 + $0x18] sm:$0xf]
    %v441 = vld [vmem:[#allocation8 + $0x1c] sm:$0xf]
    %v442 = vld [vmem:[#allocation8 + $0x20] sm:$0xf]
    %v443 = vld [vmem:[#allocation8 + $0x24] sm:$0xf]
    %v444 = vld [vmem:[#allocation8 + $0x28] sm:$0xf]
    %v445 = vld [vmem:[#allocation8 + $0x2c] sm:$0xf]
    %v446 = vld [vmem:[#allocation8 + $0x30] sm:$0xf]
    %v447 = vld [vmem:[#allocation8 + $0x34] sm:$0xf]
    %v448 = vld [vmem:[#allocation8 + $0x38] sm:$0xf]
    %v449 = vld [vmem:[#allocation8 + $0x3c] sm:$0xf]
    %v450 = vld [vmem:[#allocation8 + $0x40] sm:$0xf]
    %v451 = vld [vmem:[#allocation8 + $0x44] sm:$0xf]
    %v452 = vld [vmem:[#allocation8 + $0x48] sm:$0xf]
    %v453 = vld [vmem:[#allocation8 + $0x4c] sm:$0xf]
    %v454 = vld [vmem:[#allocation8 + $0x50] sm:$0xf]
    %v455 = vld [vmem:[#allocation8 + $0x54] sm:$0xf]
    %v456 = vld [vmem:[#allocation8 + $0x58] sm:$0xf]
    %v457 = vld [vmem:[#allocation8 + $0x5c] sm:$0xf]
    %v458 = vld [vmem:[#allocation8 + $0x60] sm:$0xf]
    %v459 = vld [vmem:[#allocation8 + $0x64] sm:$0xf]
    %v460 = vld [vmem:[#allocation8 + $0x68] sm:$0xf]
    %v461 = vld [vmem:[#allocation8 + $0x6c] sm:$0xf]
    %v462 = vld [vmem:[#allocation8 + $0x70] sm:$0xf]
    %v463 = vld [vmem:[#allocation8 + $0x74] sm:$0xf]
    %v464 = vld [vmem:[#allocation8 + $0x78] sm:$0xf]
    %v465 = vld [vmem:[#allocation8 + $0x7c] sm:$0xf]
    %v498 = vunpack.c.l.b16 %v434
    %v499 = vunpack.c.l.b16 %v435
    %v500 = vunpack.c.l.b16 %v436
    %v501 = vunpack.c.l.b16 %v437
    %v502 = vunpack.c.l.b16 %v438
    %v503 = vunpack.c.l.b16 %v439
    %v504 = vunpack.c.l.b16 %v440
    %v505 = vunpack.c.l.b16 %v441
    %v506 = vunpack.c.l.b16 %v442
    %v507 = vunpack.c.l.b16 %v443
    %v508 = vunpack.c.l.b16 %v444
    %v509 = vunpack.c.l.b16 %v445
    %v510 = vunpack.c.l.b16 %v446
    %v511 = vunpack.c.l.b16 %v447
    %v512 = vunpack.c.l.b16 %v448
    %v513 = vunpack.c.l.b16 %v449
    %v514 = vunpack.c.l.b16 %v450
    %v515 = vunpack.c.l.b16 %v451
    %v516 = vunpack.c.l.b16 %v452
    %v517 = vunpack.c.l.b16 %v453
    %v518 = vunpack.c.l.b16 %v454
    %v519 = vunpack.c.l.b16 %v455
    %v520 = vunpack.c.l.b16 %v456
    %v521 = vunpack.c.l.b16 %v457
    %v522 = vunpack.c.l.b16 %v458
    %v523 = vunpack.c.l.b16 %v459
    %v524 = vunpack.c.l.b16 %v460
    %v525 = vunpack.c.l.b16 %v461
    %v526 = vunpack.c.l.b16 %v462
    %v527 = vunpack.c.l.b16 %v463
    %v528 = vunpack.c.l.b16 %v464
    %v529 = vunpack.c.l.b16 %v465
    %v530 = vpack.c.b16 %v499, %v498
    %v531 = vpack.c.b16 %v501, %v500
    %v532 = vpack.c.b16 %v503, %v502
    %v533 = vpack.c.b16 %v505, %v504
    %v534 = vpack.c.b16 %v507, %v506
    %v535 = vpack.c.b16 %v509, %v508
    %v536 = vpack.c.b16 %v511, %v510
    %v537 = vpack.c.b16 %v513, %v512
    %v538 = vpack.c.b16 %v515, %v514
    %v539 = vpack.c.b16 %v517, %v516
    %v540 = vpack.c.b16 %v519, %v518
    %v541 = vpack.c.b16 %v521, %v520
    %v542 = vpack.c.b16 %v523, %v522
    %v543 = vpack.c.b16 %v525, %v524
    %v544 = vpack.c.b16 %v527, %v526
    %v545 = vpack.c.b16 %v529, %v528
    %562 = vmatprep.subr.bf16.mxu0 0
    %563 = vmatpush1.bf16.msra.mxu0 %v537
    %564 = vmatprep.subr.bf16.mxu0 0
    %565 = vmatpush1.bf16.msra.mxu0 %v536
    %566 = vmatprep.subr.bf16.mxu0 0
    %567 = vmatpush1.bf16.msra.mxu0 %v535
    %568 = vmatprep.subr.bf16.mxu0 0
    %569 = vmatpush1.bf16.msra.mxu0 %v534
    %570 = vmatprep.subr.bf16.mxu0 0
    %571 = vmatpush1.bf16.msra.mxu0 %v533
    %572 = vmatprep.subr.bf16.mxu0 0
    %573 = vmatpush1.bf16.msra.mxu0 %v532
    %574 = vmatprep.subr.bf16.mxu0 0
    %575 = vmatpush1.bf16.msra.mxu0 %v531
    %576 = vmatprep.subr.bf16.mxu0 0
    %577 = vmatpush1.bf16.msra.mxu0 %v530
    %578 = vmatprep.subr.bf16.mxu0 0
    %579 = vmatpush2.bf16.msra.mxu0 %v545
    %580 = vmatprep.subr.bf16.mxu0 0
    %581 = vmatpush2.bf16.msra.mxu0 %v544
    %582 = vmatprep.subr.bf16.mxu0 0
    %583 = vmatpush2.bf16.msra.mxu0 %v543
    %584 = vmatprep.subr.bf16.mxu0 0
    %585 = vmatpush2.bf16.msra.mxu0 %v542
    %586 = vmatprep.subr.bf16.mxu0 0
    %587 = vmatpush2.bf16.msra.mxu0 %v541
    %588 = vmatprep.subr.bf16.mxu0 0
    %589 = vmatpush2.bf16.msra.mxu0 %v540
    %590 = vmatprep.subr.bf16.mxu0 0
    %591 = vmatpush2.bf16.msra.mxu0 %v539
    %592 = vmatprep.subr.bf16.mxu0 0
    %593 = vmatpush2.bf16.msra.mxu0 %v538
    %594 = vmatprep.mubr.bf16.mxu0 %v433
    %595 = vmatmul.mubr.bf16.gmra.mxu0 %v432
    %v596 = vpop.f32.mrf.mxu0
    %v597 = vadd.f32 0.0, %v596
    %v598 = vpop.f32.mrf.mxu0
    %v599 = vpop.f32.mrf.mxu0
    %v600 = vadd.f32 0.0, %v599
    %v601 = vpop.f32.mrf.mxu0
    %602 = vdwg.mxu0
    %v603 = vadd.f32 %v81, %v597
    %v604 = vadd.f32 %v82, %v600
    %v605 = vld [vmem:[%s4] sm:$0x1]
    %v607 = vlaneseq
    %v608 = vshrl.u32 %v607, 7
    %v609 = vsub.s32 0, %v608
    %v610 = vrot.slane %v605, %v609
    %v612 = vadd.f32 %v603, %v610
    %v613 = vadd.f32 %v604, %v610
    %v614 = vld [vmem:[%s5] sm:$0x1]
    %v615 = vld [vmem:[%s6] sm:$0x1]
    %616 = vadd.xlane.f32.xlu0 %v612
    %v617 = vpop.xlane.xlu0 %616
    %618 = vadd.xlane.f32.xlu0 %v613
    %v619 = vpop.xlane.xlu0 %618
    %v620 = vrcp.pop 128.0
    %v621 = vmul.f32 %v617, %v620
    %v622 = vmul.f32 %v619, %v620
    %v623 = vsub.f32 %v612, %v621
    %v624 = vsub.f32 %v613, %v622
    %v625 = vmul.f32 %v623, %v623
    %v626 = vmul.f32 %v624, %v624
    %627 = vadd.xlane.f32.xlu0 %v625
    %v628 = vpop.xlane.xlu0 %627
    %629 = vadd.xlane.f32.xlu0 %v626
    %v630 = vpop.xlane.xlu0 %629
    %v631 = vmul.f32 %v628, %v620
    %v632 = vmul.f32 %v630, %v620
    %v633 = vadd.f32 %v631, 1e-12
    %v634 = vadd.f32 %v632, 1e-12
    %v635 = vrsqrt.pop %v633
    %v636 = vrsqrt.pop %v634
    %v637 = vmul.f32 %v623, %v635
    %v638 = vmul.f32 %v624, %v636
    %v640 = vlaneseq
    %v641 = vshrl.u32 %v640, 7
    %v642 = vsub.s32 0, %v641
    %v643 = vrot.slane %v614, %v642
    %v645 = vmul.f32 %v637, %v643
    %v646 = vmul.f32 %v638, %v643
    %v648 = vlaneseq
    %v649 = vshrl.u32 %v648, 7
    %v650 = vsub.s32 0, %v649
    %v651 = vrot.slane %v615, %v650
    %v653 = vadd.f32 %v645, %v651
    %v654 = vadd.f32 %v646, %v651
    %655 = vst [vmem:[#allocation10] sm:$0xff] %v653
    %656 = vst [vmem:[#allocation10 + $0x8] sm:$0xff] %v654
    // Predicated region
    $region46: #{tpu_custom_call.1} parent=1 // pred_check
      _
    $region47: #{tpu_custom_call.1} parent=1 // pred_check_branch
      %658 = sbr.rel (0) target = $region49
    $region48: #{tpu_custom_call.1} parent=1 // pred_region
      %s660 = ssub.s32 256, 256
      %661 = vsyncadd [#allocation4], %s660
      %s662 = sshll.u32 [#allocation10], 4
      %s663 = int_to_ptr.vmem [resolvable:$true] %s662
      %668 = dma.vmem_to_hbm [thread:$0]  %s663, 256, %s7, [#allocation4], 128, 128, 8
    $region49: #{tpu_custom_call.1} parent=1 // pred_fallthru
      _
    // Predicated region
    $region50: #{tpu_custom_call.1} parent=1 // pred_check
      _
    $region51: #{tpu_custom_call.1} parent=1 // pred_check_branch
      %670 = sbr.rel (0) target = $region53
    $region52: #{tpu_custom_call.1} parent=1 // pred_region
      %671 = dma.done [#allocation4], 256
    $region53: #{tpu_custom_call.1} parent=1 // pred_fallthru
      _
    %672 = vsyncpa [#allocation3], 1
    %673 = vsyncpa [#allocation6], 1
    %674 = vsyncpa [#allocation9], 1
    %675 = vsyncpa [#allocation4], 1

</llo_original>
